<compile_context>
chip_gen: v5e
topology: v5e:2x2
jax: 0.10.0
libtpu: 0.0.40
codegen_flags: <defaults>
</compile_context>

<pallas_src>
import functools

import jax
import jax.numpy as jnp
from jax.experimental import pallas as pl
from jax.experimental.pallas import tpu as pltpu

NUM_CLASSES = 21

ACT_DTYPE = jnp.bfloat16       # intermediate activations
MATMUL_DTYPE = jnp.bfloat16    # MXU operands (accumulation stays f32)

try:
    _VMEM_CAP = int(pltpu.get_tpu_info().vmem_capacity_bytes)
except Exception:  # noqa: BLE001 - be robust if the query is unavailable
    _VMEM_CAP = 64 * 1024 * 1024

_VMEM_LIMIT = min(_VMEM_CAP * 3 // 4, 112 * 1024 * 1024)   # 48 MiB on v7x, 96 MiB on v5e/v6e
_TILE_BUDGET = min(_VMEM_CAP // 4, 24 * 1024 * 1024)       # per-grid-step working set target


def _largest_divisor_leq(n, cap):
    cap = max(1, min(n, int(cap)))
    for d in range(cap, 0, -1):
        if n % d == 0:
            return d
    return 1


# ----------------------------------------------------------------------------
# Pallas kernels
# ----------------------------------------------------------------------------
def _conv_kernel(x_ref, w_ref, b_ref, o_ref, *, relu):
    """Stride-1 'valid' conv on one (row-tile, Cout-tile) block.

    x_ref : (TH+KH-1, Wp, Cin)   input rows incl. halo (bf16)
    w_ref : (KH, KW, Cin, TCO)   (bf16)
    b_ref : (1, TCO)             (f32)
    o_ref : (TH, Wout, TCO)
    """
    KH, KW, Cin, TCO = w_ref.shape
    TH, Wout, _ = o_ref.shape
    acc = None
    for ky in range(KH):
        for kx in range(KW):
            xs = x_ref[ky:ky + TH, kx:kx + Wout, :].reshape(TH * Wout, Cin)
            part = jnp.dot(xs, w_ref[ky, kx],
                           preferred_element_type=jnp.float32)
            acc = part if acc is None else acc + part
    acc = acc + b_ref[...]
    if relu:
        acc = jnp.maximum(acc, 0.0)
    o_ref[...] = acc.reshape(TH, Wout, TCO).astype(o_ref.dtype)


def _deconv2x_kernel(x_ref, w_ref, b_ref, o_ref, *, relu):
    """Phase-decomposed ConvTranspose2d(k=3, s=2, p=1, output_padding=1).

    x_ref : (H+1, W+1, Cin)  input padded by one zero row/col at bottom/right
    w_ref : (3, 3, Cin, Cout) PyTorch kernel taps (NOT flipped)
    b_ref : (1, Cout) f32
    o_ref : (4, H, W, Cout)  phase-major output; phase p = 2*py + px holds
            out[2m+py, 2n+px] = sum of taps (see derivation below) + bias.
    """
    Hp1, Wp1, Cin = x_ref.shape
    H, W = Hp1 - 1, Wp1 - 1
    Cout = o_ref.shape[-1]

    def xs(dy, dx):
        return x_ref[dy:dy + H, dx:dx + W, :].reshape(H * W, Cin)

    def mm(a, ky, kx):
        return jnp.dot(a, w_ref[ky, kx], preferred_element_type=jnp.float32)

    x00 = xs(0, 0)
    x01 = xs(0, 1)
    x10 = xs(1, 0)
    x11 = xs(1, 1)

    # out[2m  ,2n  ] = x[m  ,n  ]@W11
    # out[2m  ,2n+1] = x[m  ,n+1]@W10 + x[m  ,n]@W12
    # out[2m+1,2n  ] = x[m+1,n  ]@W01 + x[m  ,n]@W21
    # out[2m+1,2n+1] = x[m+1,n+1]@W00 + x[m+1,n]@W02 + x[m,n+1]@W20 + x[m,n]@W22
    p00 = mm(x00, 1, 1)
    p01 = mm(x01, 1, 0) + mm(x00, 1, 2)
    p10 = mm(x10, 0, 1) + mm(x00, 2, 1)
    p11 = mm(x11, 0, 0) + mm(x10, 0, 2) + mm(x01, 2, 0) + mm(x00, 2, 2)

    bias = b_ref[...]

    def emit(idx, p):
        r = p + bias
        if relu:
            r = jnp.maximum(r, 0.0)
        o_ref[idx] = r.reshape(H, W, Cout).astype(o_ref.dtype)

    emit(0, p00)
    emit(1, p01)
    emit(2, p10)
    emit(3, p11)


def _score2_kernel(xa_ref, xb_ref, wa_ref, wb_ref, b_ref, o_ref):
    """Fused channel-concat + 1x1 scoring conv: o = [xa, xb] @ [wa; wb] + b."""
    Hh, Ww, Ca = xa_ref.shape
    Cb = xb_ref.shape[-1]
    M = Hh * Ww
    acc = jnp.dot(xa_ref[...].reshape(M, Ca), wa_ref[...],
                  preferred_element_type=jnp.float32)
    acc = acc + jnp.dot(xb_ref[...].reshape(M, Cb), wb_ref[...],
                        preferred_element_type=jnp.float32)
    acc = acc + b_ref[...]
    o_ref[...] = acc.reshape(Hh, Ww, -1).astype(o_ref.dtype)


def _maxpool_kernel(x_ref, o_ref):
    """2x2/2 max pool. Input block (2*TB, Wo, 2*C): W-pairs already folded
    into the lane axis by a free HBM reshape in the wrapper."""
    tb2, Wo, C2 = x_ref.shape
    C = C2 // 2
    x = x_ref[...].reshape(tb2 // 2, 2, Wo, C2)
    m = jnp.maximum(x[:, 0], x[:, 1])                 # pair rows
    o_ref[...] = jnp.maximum(m[:, :, :C], m[:, :, C:]).astype(o_ref.dtype)


# ----------------------------------------------------------------------------
# Pallas-backed layer wrappers
# ----------------------------------------------------------------------------
def conv2d(x, w, b, *, padding=0, relu=False, out_dtype=None, max_rows=None):
    """Stride-1 conv. x: (N,H,W,Cin) NHWC, w: (KH,KW,Cin,Cout) HWIO, b: (Cout,)."""
    N, H, W, Cin = x.shape
    KH, KW, _, Cout = w.shape
    out_dtype = ACT_DTYPE if out_dtype is None else out_dtype

    # conv1_1-style tiny-Cin: fold the KHxKW taps into the contraction dim
    # (one K = KH*KW*Cin matmul instead of 9 matmuls with K=3).
    if Cin <= 8 and KH * KW > 1:
        if padding:
            x = jnp.pad(x, ((0, 0), (padding,) * 2, (padding,) * 2, (0, 0)))
        Hout, Wout = x.shape[1] - KH + 1, x.shape[2] - KW + 1
        cols = [x[:, ky:ky + Hout, kx:kx + Wout, :]
                for ky in range(KH) for kx in range(KW)]
        xcol = jnp.concatenate(cols, axis=-1)                # (N,Hout,Wout,KH*KW*Cin)
        wcol = w.reshape(1, 1, KH * KW * Cin, Cout)
        return conv2d(xcol, wcol, b, padding=0, relu=relu,
                      out_dtype=out_dtype, max_rows=max_rows)

    x = x.astype(MATMUL_DTYPE)
    w = w.astype(MATMUL_DTYPE)
    b2 = b.astype(jnp.float32).reshape(1, Cout)

    if padding:
        x = jnp.pad(x, ((0, 0), (padding,) * 2, (padding,) * 2, (0, 0)))
    Hp, Wp = x.shape[1], x.shape[2]
    Hout, Wout = Hp - KH + 1, Wp - KW + 1

    # ---- Cout (lane-axis) tiling -------------------------------------------
    if Cout % 256 == 0 and Cout > 256:
        TCO = 256
    elif Cout % 128 == 0 and Cout > 128:
        TCO = 128
    else:
        TCO = Cout
    n_co = Cout // TCO

    # ---- output-row tiling against the per-step VMEM budget ----------------
    in_bytes = jnp.dtype(MATMUL_DTYPE).itemsize
    out_bytes = jnp.dtype(out_dtype).itemsize
    in_row = Wp * Cin * in_bytes
    out_row = Wout * TCO * (out_bytes + 4)            # out tile + f32 accumulator
    w_tile = KH * KW * Cin * TCO * in_bytes
    cap = max(1, (_TILE_BUDGET - w_tile - (KH - 1) * in_row) // max(1, in_row + out_row))
    if max_rows is not None:
        cap = min(cap, max_rows)
    TH = _largest_divisor_leq(Hout, cap)
    n_h = Hout // TH
    SH = TH + KH - 1

    # ---- (possibly haloed) row-slab view of the padded input ---------------
    if n_h == 1:
        x_slab = x[:, None]                                   # (N,1,Hp,Wp,Cin)
    elif KH == 1:
        x_slab = x.reshape(N, n_h, TH, Wp, Cin)               # free reshape
    else:
        x_slab = jnp.concatenate(
            [x[:, t * TH: t * TH + SH][:, None] for t in range(n_h)], axis=1)

    kernel = functools.partial(_conv_kernel, relu=relu)
    return pl.pallas_call(
        kernel,
        out_shape=jax.ShapeDtypeStruct((N, Hout, Wout, Cout), out_dtype),
        grid_spec=pltpu.PrefetchScalarGridSpec(
            num_scalar_prefetch=0,
            grid=(N, n_h, n_co),
            in_specs=[
                pl.BlockSpec((None, None, SH, Wp, Cin),
                             lambda n, h, co: (n, h, 0, 0, 0)),
                pl.BlockSpec((KH, KW, Cin, TCO),
                             lambda n, h, co: (0, 0, 0, co)),
                pl.BlockSpec((1, TCO), lambda n, h, co: (0, co)),
            ],
            out_specs=pl.BlockSpec((None, TH, Wout, TCO),
                                   lambda n, h, co: (n, h, 0, co)),
        ),
        compiler_params=pltpu.CompilerParams(
            dimension_semantics=("parallel", "parallel", "parallel"),
            vmem_limit_bytes=_VMEM_LIMIT,
        ),
    )(x_slab, w, b2)


def conv_transpose2x(x, w_t, b, *, relu=False, out_dtype=None):
    """ConvTranspose2d(k=3, stride=2, padding=1, output_padding=1), Pallas
    phase-decomposed (no zero-dilated tensor)."""
    Cin, Cout, K, K2 = w_t.shape
    assert K == 3 and K2 == 3
    N, H, W, _ = x.shape
    out_dtype = ACT_DTYPE if out_dtype is None else out_dtype

    w = jnp.transpose(w_t, (2, 3, 0, 1)).astype(MATMUL_DTYPE)     # (3,3,Cin,Cout)
    xp = jnp.pad(x.astype(MATMUL_DTYPE), ((0, 0), (0, 1), (0, 1), (0, 0)))
    b2 = b.astype(jnp.float32).reshape(1, Cout)

    out_ph = pl.pallas_call(
        functools.partial(_deconv2x_kernel, relu=relu),
        out_shape=jax.ShapeDtypeStruct((N, 4, H, W, Cout), out_dtype),
        grid_spec=pltpu.PrefetchScalarGridSpec(
            num_scalar_prefetch=0,
            grid=(N,),
            in_specs=[
                pl.BlockSpec((None, H + 1, W + 1, Cin), lambda n: (n, 0, 0, 0)),
                pl.BlockSpec((3, 3, Cin, Cout), lambda n: (0, 0, 0, 0)),
                pl.BlockSpec((1, Cout), lambda n: (0, 0)),
            ],
            out_specs=pl.BlockSpec((None, 4, H, W, Cout),
                                   lambda n: (n, 0, 0, 0, 0)),
        ),
        compiler_params=pltpu.CompilerParams(
            dimension_semantics=("parallel",),
            vmem_limit_bytes=_VMEM_LIMIT,
        ),
    )(xp, w, b2)

    # (N,4,H,W,C) -> (N,2,2,H,W,C) -> (N,H,2,W,2,C) -> (N,2H,2W,C)   (small glue)
    out = out_ph.reshape(N, 2, 2, H, W, Cout)
    out = jnp.transpose(out, (0, 3, 1, 4, 2, 5)).reshape(N, 2 * H, 2 * W, Cout)
    return out


def conv_transpose_head(x, w_t, b, *, stride, out_dtype=jnp.float32):
    """ConvTranspose2d with stride >= kernel and padding=0 (upconv_32s/16s/8s).

    The K*K taps of each input pixel never overlap, so the only real work is a
    single (Cin -> K*K*Cout) matmul (done by the Pallas conv kernel); every
    other output position is just the bias (zero-FLOP XLA layout glue)."""
    Cin, Cout, K, K2 = w_t.shape
    assert K == K2 and stride >= K
    N, H, W, _ = x.shape
    s = stride

    w1 = jnp.transpose(w_t, (0, 2, 3, 1)).reshape(1, 1, Cin, K * K * Cout)
    bt = jnp.tile(b, K * K)
    y = conv2d(x, w1, bt, padding=0, relu=False, out_dtype=jnp.float32)
    y = y.reshape(N, H, W, K, K, Cout).transpose(0, 1, 3, 2, 4, 5)  # (N,H,K,W,K,C)

    out = jnp.broadcast_to(b.astype(out_dtype).reshape(1, 1, 1, 1, 1, Cout),
                           (N, H, s, W, s, Cout))
    out = out.at[:, :, :K, :, :K, :].set(y.astype(out_dtype))
    return out.reshape(N, H * s, W * s, Cout)


def score_concat_conv(xa, xb, w, b, out_dtype=None):
    """Fused torch.cat([xa, xb], C) + 1x1 Conv2d without materializing the
    concatenated tensor. w: (1,1,Ca+Cb,Cout)."""
    N, H, W, Ca = xa.shape
    Cb = xb.shape[-1]
    Cout = w.shape[-1]
    out_dtype = ACT_DTYPE if out_dtype is None else out_dtype

    wa = w[0, 0, :Ca, :].astype(MATMUL_DTYPE)
    wb = w[0, 0, Ca:, :].astype(MATMUL_DTYPE)
    b2 = b.astype(jnp.float32).reshape(1, Cout)
    xa = xa.astype(MATMUL_DTYPE)
    xb = xb.astype(MATMUL_DTYPE)

    return pl.pallas_call(
        _score2_kernel,
        out_shape=jax.ShapeDtypeStruct((N, H, W, Cout), out_dtype),
        grid_spec=pltpu.PrefetchScalarGridSpec(
            num_scalar_prefetch=0,
            grid=(N,),
            in_specs=[
                pl.BlockSpec((None, H, W, Ca), lambda n: (n, 0, 0, 0)),
                pl.BlockSpec((None, H, W, Cb), lambda n: (n, 0, 0, 0)),
                pl.BlockSpec((Ca, Cout), lambda n: (0, 0)),
                pl.BlockSpec((Cb, Cout), lambda n: (0, 0)),
                pl.BlockSpec((1, Cout), lambda n: (0, 0)),
            ],
            out_specs=pl.BlockSpec((None, H, W, Cout), lambda n: (n, 0, 0, 0)),
        ),
        compiler_params=pltpu.CompilerParams(
            dimension_semantics=("parallel",),
            vmem_limit_bytes=_VMEM_LIMIT,
        ),
    )(xa, xb, wa, wb, b2)


def maxpool2x2(x):
    """nn.MaxPool2d(kernel_size=2, stride=2) on NHWC input (H, W even)."""
    N, H, W, C = x.shape
    Ho, Wo = H // 2, W // 2
    xr = x.reshape(N, H, Wo, 2 * C)        # free HBM reshape: fold W-pairs into lanes

    per_row = (2 * Wo * 2 * C + Wo * C) * jnp.dtype(x.dtype).itemsize
    TB = _largest_divisor_leq(Ho, max(1, _TILE_BUDGET // max(1, per_row)))
    n_t = Ho // TB

    return pl.pallas_call(
        _maxpool_kernel,
        out_shape=jax.ShapeDtypeStruct((N, Ho, Wo, C), x.dtype),
        grid_spec=pltpu.PrefetchScalarGridSpec(
            num_scalar_prefetch=0,
            grid=(N, n_t),
            in_specs=[pl.BlockSpec((None, 2 * TB, Wo, 2 * C),
                                   lambda n, t: (n, t, 0, 0))],
            out_specs=pl.BlockSpec((None, TB, Wo, C), lambda n, t: (n, t, 0, 0)),
        ),
        compiler_params=pltpu.CompilerParams(
            dimension_semantics=("parallel", "parallel"),
            vmem_limit_bytes=_VMEM_LIMIT,
        ),
    )(xr)


# ----------------------------------------------------------------------------
# Parameters (deterministic synthetic init)
# ----------------------------------------------------------------------------
def _init_conv(key, cin, cout, k):
    kw, kb = jax.random.split(key)
    fan_in = cin * k * k
    w = jax.random.normal(kw, (k, k, cin, cout), jnp.float32) / jnp.sqrt(fan_in)
    b = jax.random.normal(kb, (cout,), jnp.float32) * 0.01
    return w, b


def _init_deconv(key, cin, cout, k):
    kw, kb = jax.random.split(key)
    fan_in = cin * k * k
    # PyTorch ConvTranspose2d weight layout: (Cin, Cout, KH, KW)
    w = jax.random.normal(kw, (cin, cout, k, k), jnp.float32) / jnp.sqrt(fan_in)
    b = jax.random.normal(kb, (cout,), jnp.float32) * 0.01
    return w, b


def init_params(key, mode):
    p = {}
    keys = iter(jax.random.split(key, 32))
    vgg_cfg = [("conv1_1", 3, 64), ("conv1_2", 64, 64),
               ("conv2_1", 64, 128), ("conv2_2", 128, 128),
               ("conv3_1", 128, 256), ("conv3_2", 256, 256), ("conv3_3", 256, 256),
               ("conv4_1", 256, 512), ("conv4_2", 512, 512), ("conv4_3", 512, 512),
               ("conv5_1", 512, 512), ("conv5_2", 512, 512), ("conv5_3", 512, 512)]
    for name, cin, cout in vgg_cfg:
        p[name] = _init_conv(next(keys), cin, cout, 3)
    p["conv14"] = _init_conv(next(keys), 512, 512, 3)
    p["conv15"] = _init_conv(next(keys), 512, 512, 3)
    p["upconv_32s"] = _init_deconv(next(keys), 512, NUM_CLASSES, 3)
    if mode == "3-stream":
        p["upconv15_2x"] = _init_deconv(next(keys), 512, 512, 3)
        p["scoring_conv_16s"] = _init_conv(next(keys), 1024, NUM_CLASSES, 1)
        p["upconv_16s"] = _init_deconv(next(keys), NUM_CLASSES, NUM_CLASSES, 3)
        p["upconv15_2x_2x"] = _init_deconv(next(keys), 512, 256, 3)
        p["scoring_conv_8s"] = _init_conv(next(keys), 512, NUM_CLASSES, 1)
        p["upconv_8s"] = _init_deconv(next(keys), NUM_CLASSES, NUM_CLASSES, 3)
    return p


# ----------------------------------------------------------------------------
# Forward pass
# ----------------------------------------------------------------------------
def vgg16_backbone(x, p):
    """Standard VGG16 features; returns (pool5, pool4, pool3) in NHWC."""
    def c(h, name):
        w, b = p[name]
        return conv2d(h, w, b, padding=1, relu=True)

    x = c(x, "conv1_1"); x = c(x, "conv1_2"); x = maxpool2x2(x)
    x = c(x, "conv2_1"); x = c(x, "conv2_2"); x = maxpool2x2(x)
    x = c(x, "conv3_1"); x = c(x, "conv3_2"); x = c(x, "conv3_3")
    pool3 = maxpool2x2(x)
    x = c(pool3, "conv4_1"); x = c(x, "conv4_2"); x = c(x, "conv4_3")
    pool4 = maxpool2x2(x)
    x = c(pool4, "conv5_1"); x = c(x, "conv5_2"); x = c(x, "conv5_3")
    pool5 = maxpool2x2(x)
    return pool5, pool4, pool3


def fcn_vgg16_forward(x_nchw, params, *, mode="3-stream"):
    """FCNVGG16Full.forward. Input/outputs in PyTorch NCHW layout (logits f32)."""
    x = jnp.transpose(x_nchw, (0, 2, 3, 1)).astype(ACT_DTYPE)  # NCHW -> NHWC
    pool5, pool4, pool3 = vgg16_backbone(x, params)

    w14, b14 = params["conv14"]
    w15, b15 = params["conv15"]
    conv15_out = conv2d(conv2d(pool5, w14, b14, padding=1, relu=True),
                        w15, b15, padding=1, relu=True)

    wt, bt = params["upconv_32s"]
    out_32s = conv_transpose_head(conv15_out, wt, bt, stride=32)

    if mode == "fcn-32s":
        return jnp.transpose(out_32s, (0, 3, 1, 2))

    if mode == "3-stream":
        # NOTE: relu(conv15_out) / relu(conv15_2x_out) in the reference are
        # no-ops (already ReLU'd inside the producing kernels) -> removed.
        wt, bt = params["upconv15_2x"]
        conv15_2x_out = conv_transpose2x(conv15_out, wt, bt, relu=True)

        w, b = params["scoring_conv_16s"]
        out_16s = score_concat_conv(pool4, conv15_2x_out, w, b)   # fused cat + 1x1
        wt, bt = params["upconv_16s"]
        out_16s = conv_transpose_head(out_16s, wt, bt, stride=16)

        wt, bt = params["upconv15_2x_2x"]
        conv15_4x_out = conv_transpose2x(conv15_2x_out, wt, bt, relu=True)

        w, b = params["scoring_conv_8s"]
        out_8s = score_concat_conv(pool3, conv15_4x_out, w, b)    # fused cat + 1x1
        wt, bt = params["upconv_8s"]
        out_8s = conv_transpose_head(out_8s, wt, bt, stride=8)

        return (jnp.transpose(out_32s, (0, 3, 1, 2)),
                jnp.transpose(out_16s, (0, 3, 1, 2)),
                jnp.transpose(out_8s, (0, 3, 1, 2)))

    # Matches the reference module: any other mode string (incl. the default
    # 'FCN-32s', which doesn't match 'fcn-32s') falls through and returns None.
    return None


# ----------------------------------------------------------------------------
if __name__ == "__main__":
    key = jax.random.PRNGKey(0)
    pkey, xkey, skey = jax.random.split(key, 3)

    # --- self-check: row-tiled + Cout-tiled conv path vs. single-block path ---
    k1, k2, k3 = jax.random.split(skey, 3)
    cx = jax.random.normal(k1, (1, 16, 16, 64), jnp.float32)
    cw = jax.random.normal(k2, (3, 3, 64, 256), jnp.float32) * 0.05
    cb = jax.random.normal(k3, (256,), jnp.float32) * 0.01
    y_tiled = conv2d(cx, cw, cb, padding=1, relu=True, max_rows=4)
    y_whole = conv2d(cx, cw, cb, padding=1, relu=True)
    jax.block_until_ready((y_tiled, y_whole))
    assert jnp.allclose(y_tiled.astype(jnp.float32), y_whole.astype(jnp.float32),
                        atol=1e-2, rtol=1e-2)

    # --- full forward, NCHW in / NCHW logits out ---
    mode = "3-stream"
    params = init_params(pkey, mode)
    x = jax.random.normal(xkey, (1, 3, 32, 32), jnp.float32)

    fwd = jax.jit(functools.partial(fcn_vgg16_forward, mode=mode))
    out_32s, out_16s, out_8s = fwd(x, params)
    jax.block_until_ready((out_32s, out_16s, out_8s))

    assert out_32s.shape == (1, NUM_CLASSES, 32, 32), out_32s.shape
    assert out_16s.shape == (1, NUM_CLASSES, 32, 32), out_16s.shape
    assert out_8s.shape == (1, NUM_CLASSES, 32, 32), out_8s.shape
    assert all(bool(jnp.isfinite(o).all()) for o in (out_32s, out_16s, out_8s))

    print("KERNEL_OK")
</pallas_src>

<mosaic_0001>
module attributes {stable_mosaic.version = 11 : i64} {
  func.func @_conv_kernel(%arg0: i32, %arg1: i32, %arg2: i32, %arg3: memref<1x1x6x18x64xbf16, #tpu.memory_space<vmem>>, %arg4: memref<3x3x64x128xbf16, #tpu.memory_space<vmem>>, %arg5: memref<1x128xf32, #tpu.memory_space<vmem>>, %arg6: memref<1x4x16x128xbf16, #tpu.memory_space<vmem>>) attributes {dimension_semantics = [#tpu.dimension_semantics<parallel>, #tpu.dimension_semantics<parallel>, #tpu.dimension_semantics<parallel>], iteration_bounds = array<i64: 1, 4, 2>, scalar_prefetch = 0 : i64, scratch_operands = 0 : i64, tpu.core_type = #tpu.core_type<tc>, window_params = [{transform_indices = @transform_0, window_bounds = array<i64: 1, 1, 6, 18, 64>}, {transform_indices = @transform_1, window_bounds = array<i64: 3, 3, 64, 128>}, {transform_indices = @transform_2, window_bounds = array<i64: 1, 128>}, {transform_indices = @transform_3, window_bounds = array<i64: 1, 4, 16, 128>}]} {
    %c0 = arith.constant 0 : index
    %c0_0 = arith.constant 0 : index
    %c0_1 = arith.constant 0 : index
    %c0_2 = arith.constant 0 : index
    %c0_3 = arith.constant 0 : index
    %0 = vector.load %arg3[%c0, %c0_0, %c0_1, %c0_2, %c0_3] : memref<1x1x6x18x64xbf16, #tpu.memory_space<vmem>>, vector<1x1x4x16x64xbf16>
    %1 = vector.shape_cast %0 : vector<1x1x4x16x64xbf16> to vector<4x16x64xbf16>
    %2 = vector.shape_cast %1 : vector<4x16x64xbf16> to vector<64x64xbf16>
    %c0_4 = arith.constant 0 : index
    %c0_5 = arith.constant 0 : index
    %c0_6 = arith.constant 0 : index
    %c0_7 = arith.constant 0 : index
    %3 = vector.load %arg4[%c0_4, %c0_5, %c0_6, %c0_7] : memref<3x3x64x128xbf16, #tpu.memory_space<vmem>>, vector<1x1x64x128xbf16>
    %4 = vector.shape_cast %3 : vector<1x1x64x128xbf16> to vector<64x128xbf16>
    %cst = arith.constant dense<0.000000e+00> : vector<64x128xf32>
    %5 = tpu.matmul %2, %4, %cst {dimension_numbers = #tpu.dot_dimension_numbers<[1], [0], [0], [1], [0, 0, 1, 1], [], []>} : vector<64x64xbf16>, vector<64x128xbf16>, vector<64x128xf32> -> vector<64x128xf32>
    %c0_8 = arith.constant 0 : index
    %c0_9 = arith.constant 0 : index
    %c0_10 = arith.constant 0 : index
    %c1 = arith.constant 1 : index
    %c0_11 = arith.constant 0 : index
    %6 = vector.load %arg3[%c0_8, %c0_9, %c0_10, %c1, %c0_11] : memref<1x1x6x18x64xbf16, #tpu.memory_space<vmem>>, vector<1x1x4x16x64xbf16>
    %7 = vector.shape_cast %6 : vector<1x1x4x16x64xbf16> to vector<4x16x64xbf16>
    %8 = vector.shape_cast %7 : vector<4x16x64xbf16> to vector<64x64xbf16>
    %c0_12 = arith.constant 0 : index
    %c1_13 = arith.constant 1 : index
    %c0_14 = arith.constant 0 : index
    %c0_15 = arith.constant 0 : index
    %9 = vector.load %arg4[%c0_12, %c1_13, %c0_14, %c0_15] : memref<3x3x64x128xbf16, #tpu.memory_space<vmem>>, vector<1x1x64x128xbf16>
    %10 = vector.shape_cast %9 : vector<1x1x64x128xbf16> to vector<64x128xbf16>
    %cst_16 = arith.constant dense<0.000000e+00> : vector<64x128xf32>
    %11 = tpu.matmul %8, %10, %cst_16 {dimension_numbers = #tpu.dot_dimension_numbers<[1], [0], [0], [1], [0, 0, 1, 1], [], []>} : vector<64x64xbf16>, vector<64x128xbf16>, vector<64x128xf32> -> vector<64x128xf32>
    %12 = arith.addf %5, %11 : vector<64x128xf32>
    %c0_17 = arith.constant 0 : index
    %c0_18 = arith.constant 0 : index
    %c0_19 = arith.constant 0 : index
    %c2 = arith.constant 2 : index
    %c0_20 = arith.constant 0 : index
    %13 = vector.load %arg3[%c0_17, %c0_18, %c0_19, %c2, %c0_20] : memref<1x1x6x18x64xbf16, #tpu.memory_space<vmem>>, vector<1x1x4x16x64xbf16>
    %14 = vector.shape_cast %13 : vector<1x1x4x16x64xbf16> to vector<4x16x64xbf16>
    %15 = vector.shape_cast %14 : vector<4x16x64xbf16> to vector<64x64xbf16>
    %c0_21 = arith.constant 0 : index
    %c2_22 = arith.constant 2 : index
    %c0_23 = arith.constant 0 : index
    %c0_24 = arith.constant 0 : index
    %16 = vector.load %arg4[%c0_21, %c2_22, %c0_23, %c0_24] : memref<3x3x64x128xbf16, #tpu.memory_space<vmem>>, vector<1x1x64x128xbf16>
    %17 = vector.shape_cast %16 : vector<1x1x64x128xbf16> to vector<64x128xbf16>
    %cst_25 = arith.constant dense<0.000000e+00> : vector<64x128xf32>
    %18 = tpu.matmul %15, %17, %cst_25 {dimension_numbers = #tpu.dot_dimension_numbers<[1], [0], [0], [1], [0, 0, 1, 1], [], []>} : vector<64x64xbf16>, vector<64x128xbf16>, vector<64x128xf32> -> vector<64x128xf32>
    %19 = arith.addf %12, %18 : vector<64x128xf32>
    %c0_26 = arith.constant 0 : index
    %c0_27 = arith.constant 0 : index
    %c1_28 = arith.constant 1 : index
    %c0_29 = arith.constant 0 : index
    %c0_30 = arith.constant 0 : index
    %20 = vector.load %arg3[%c0_26, %c0_27, %c1_28, %c0_29, %c0_30] : memref<1x1x6x18x64xbf16, #tpu.memory_space<vmem>>, vector<1x1x4x16x64xbf16>
    %21 = vector.shape_cast %20 : vector<1x1x4x16x64xbf16> to vector<4x16x64xbf16>
    %22 = vector.shape_cast %21 : vector<4x16x64xbf16> to vector<64x64xbf16>
    %c1_31 = arith.constant 1 : index
    %c0_32 = arith.constant 0 : index
    %c0_33 = arith.constant 0 : index
    %c0_34 = arith.constant 0 : index
    %23 = vector.load %arg4[%c1_31, %c0_32, %c0_33, %c0_34] : memref<3x3x64x128xbf16, #tpu.memory_space<vmem>>, vector<1x1x64x128xbf16>
    %24 = vector.shape_cast %23 : vector<1x1x64x128xbf16> to vector<64x128xbf16>
    %cst_35 = arith.constant dense<0.000000e+00> : vector<64x128xf32>
    %25 = tpu.matmul %22, %24, %cst_35 {dimension_numbers = #tpu.dot_dimension_numbers<[1], [0], [0], [1], [0, 0, 1, 1], [], []>} : vector<64x64xbf16>, vector<64x128xbf16>, vector<64x128xf32> -> vector<64x128xf32>
    %26 = arith.addf %19, %25 : vector<64x128xf32>
    %c0_36 = arith.constant 0 : index
    %c0_37 = arith.constant 0 : index
    %c1_38 = arith.constant 1 : index
    %c1_39 = arith.constant 1 : index
    %c0_40 = arith.constant 0 : index
    %27 = vector.load %arg3[%c0_36, %c0_37, %c1_38, %c1_39, %c0_40] : memref<1x1x6x18x64xbf16, #tpu.memory_space<vmem>>, vector<1x1x4x16x64xbf16>
    %28 = vector.shape_cast %27 : vector<1x1x4x16x64xbf16> to vector<4x16x64xbf16>
    %29 = vector.shape_cast %28 : vector<4x16x64xbf16> to vector<64x64xbf16>
    %c1_41 = arith.constant 1 : index
    %c1_42 = arith.constant 1 : index
    %c0_43 = arith.constant 0 : index
    %c0_44 = arith.constant 0 : index
    %30 = vector.load %arg4[%c1_41, %c1_42, %c0_43, %c0_44] : memref<3x3x64x128xbf16, #tpu.memory_space<vmem>>, vector<1x1x64x128xbf16>
    %31 = vector.shape_cast %30 : vector<1x1x64x128xbf16> to vector<64x128xbf16>
    %cst_45 = arith.constant dense<0.000000e+00> : vector<64x128xf32>
    %32 = tpu.matmul %29, %31, %cst_45 {dimension_numbers = #tpu.dot_dimension_numbers<[1], [0], [0], [1], [0, 0, 1, 1], [], []>} : vector<64x64xbf16>, vector<64x128xbf16>, vector<64x128xf32> -> vector<64x128xf32>
    %33 = arith.addf %26, %32 : vector<64x128xf32>
    %c0_46 = arith.constant 0 : index
    %c0_47 = arith.constant 0 : index
    %c1_48 = arith.constant 1 : index
    %c2_49 = arith.constant 2 : index
    %c0_50 = arith.constant 0 : index
    %34 = vector.load %arg3[%c0_46, %c0_47, %c1_48, %c2_49, %c0_50] : memref<1x1x6x18x64xbf16, #tpu.memory_space<vmem>>, vector<1x1x4x16x64xbf16>
    %35 = vector.shape_cast %34 : vector<1x1x4x16x64xbf16> to vector<4x16x64xbf16>
    %36 = vector.shape_cast %35 : vector<4x16x64xbf16> to vector<64x64xbf16>
    %c1_51 = arith.constant 1 : index
    %c2_52 = arith.constant 2 : index
    %c0_53 = arith.constant 0 : index
    %c0_54 = arith.constant 0 : index
    %37 = vector.load %arg4[%c1_51, %c2_52, %c0_53, %c0_54] : memref<3x3x64x128xbf16, #tpu.memory_space<vmem>>, vector<1x1x64x128xbf16>
    %38 = vector.shape_cast %37 : vector<1x1x64x128xbf16> to vector<64x128xbf16>
    %cst_55 = arith.constant dense<0.000000e+00> : vector<64x128xf32>
    %39 = tpu.matmul %36, %38, %cst_55 {dimension_numbers = #tpu.dot_dimension_numbers<[1], [0], [0], [1], [0, 0, 1, 1], [], []>} : vector<64x64xbf16>, vector<64x128xbf16>, vector<64x128xf32> -> vector<64x128xf32>
    %40 = arith.addf %33, %39 : vector<64x128xf32>
    %c0_56 = arith.constant 0 : index
    %c0_57 = arith.constant 0 : index
    %c2_58 = arith.constant 2 : index
    %c0_59 = arith.constant 0 : index
    %c0_60 = arith.constant 0 : index
    %41 = vector.load %arg3[%c0_56, %c0_57, %c2_58, %c0_59, %c0_60] : memref<1x1x6x18x64xbf16, #tpu.memory_space<vmem>>, vector<1x1x4x16x64xbf16>
    %42 = vector.shape_cast %41 : vector<1x1x4x16x64xbf16> to vector<4x16x64xbf16>
    %43 = vector.shape_cast %42 : vector<4x16x64xbf16> to vector<64x64xbf16>
    %c2_61 = arith.constant 2 : index
    %c0_62 = arith.constant 0 : index
    %c0_63 = arith.constant 0 : index
    %c0_64 = arith.constant 0 : index
    %44 = vector.load %arg4[%c2_61, %c0_62, %c0_63, %c0_64] : memref<3x3x64x128xbf16, #tpu.memory_space<vmem>>, vector<1x1x64x128xbf16>
    %45 = vector.shape_cast %44 : vector<1x1x64x128xbf16> to vector<64x128xbf16>
    %cst_65 = arith.constant dense<0.000000e+00> : vector<64x128xf32>
    %46 = tpu.matmul %43, %45, %cst_65 {dimension_numbers = #tpu.dot_dimension_numbers<[1], [0], [0], [1], [0, 0, 1, 1], [], []>} : vector<64x64xbf16>, vector<64x128xbf16>, vector<64x128xf32> -> vector<64x128xf32>
    %47 = arith.addf %40, %46 : vector<64x128xf32>
    %c0_66 = arith.constant 0 : index
    %c0_67 = arith.constant 0 : index
    %c2_68 = arith.constant 2 : index
    %c1_69 = arith.constant 1 : index
    %c0_70 = arith.constant 0 : index
    %48 = vector.load %arg3[%c0_66, %c0_67, %c2_68, %c1_69, %c0_70] : memref<1x1x6x18x64xbf16, #tpu.memory_space<vmem>>, vector<1x1x4x16x64xbf16>
    %49 = vector.shape_cast %48 : vector<1x1x4x16x64xbf16> to vector<4x16x64xbf16>
    %50 = vector.shape_cast %49 : vector<4x16x64xbf16> to vector<64x64xbf16>
    %c2_71 = arith.constant 2 : index
    %c1_72 = arith.constant 1 : index
    %c0_73 = arith.constant 0 : index
    %c0_74 = arith.constant 0 : index
    %51 = vector.load %arg4[%c2_71, %c1_72, %c0_73, %c0_74] : memref<3x3x64x128xbf16, #tpu.memory_space<vmem>>, vector<1x1x64x128xbf16>
    %52 = vector.shape_cast %51 : vector<1x1x64x128xbf16> to vector<64x128xbf16>
    %cst_75 = arith.constant dense<0.000000e+00> : vector<64x128xf32>
    %53 = tpu.matmul %50, %52, %cst_75 {dimension_numbers = #tpu.dot_dimension_numbers<[1], [0], [0], [1], [0, 0, 1, 1], [], []>} : vector<64x64xbf16>, vector<64x128xbf16>, vector<64x128xf32> -> vector<64x128xf32>
    %54 = arith.addf %47, %53 : vector<64x128xf32>
    %c0_76 = arith.constant 0 : index
    %c0_77 = arith.constant 0 : index
    %c2_78 = arith.constant 2 : index
    %c2_79 = arith.constant 2 : index
    %c0_80 = arith.constant 0 : index
    %55 = vector.load %arg3[%c0_76, %c0_77, %c2_78, %c2_79, %c0_80] : memref<1x1x6x18x64xbf16, #tpu.memory_space<vmem>>, vector<1x1x4x16x64xbf16>
    %56 = vector.shape_cast %55 : vector<1x1x4x16x64xbf16> to vector<4x16x64xbf16>
    %57 = vector.shape_cast %56 : vector<4x16x64xbf16> to vector<64x64xbf16>
    %c2_81 = arith.constant 2 : index
    %c2_82 = arith.constant 2 : index
    %c0_83 = arith.constant 0 : index
    %c0_84 = arith.constant 0 : index
    %58 = vector.load %arg4[%c2_81, %c2_82, %c0_83, %c0_84] : memref<3x3x64x128xbf16, #tpu.memory_space<vmem>>, vector<1x1x64x128xbf16>
    %59 = vector.shape_cast %58 : vector<1x1x64x128xbf16> to vector<64x128xbf16>
    %cst_85 = arith.constant dense<0.000000e+00> : vector<64x128xf32>
    %60 = tpu.matmul %57, %59, %cst_85 {dimension_numbers = #tpu.dot_dimension_numbers<[1], [0], [0], [1], [0, 0, 1, 1], [], []>} : vector<64x64xbf16>, vector<64x128xbf16>, vector<64x128xf32> -> vector<64x128xf32>
    %61 = arith.addf %54, %60 : vector<64x128xf32>
    %c0_86 = arith.constant 0 : index
    %c0_87 = arith.constant 0 : index
    %62 = vector.load %arg5[%c0_86, %c0_87] : memref<1x128xf32, #tpu.memory_space<vmem>>, vector<1x128xf32>
    %63 = vector.broadcast %62 : vector<1x128xf32> to vector<64x128xf32>
    %64 = arith.addf %61, %63 : vector<64x128xf32>
    %cst_88 = arith.constant 0.000000e+00 : f32
    %65 = vector.broadcast %cst_88 : f32 to vector<64x128xf32>
    %66 = arith.maximumf %64, %65 : vector<64x128xf32>
    %67 = vector.shape_cast %66 : vector<64x128xf32> to vector<4x16x128xf32>
    %68 = arith.truncf %67 : vector<4x16x128xf32> to vector<4x16x128xbf16>
    %c0_89 = arith.constant 0 : index
    %c0_90 = arith.constant 0 : index
    %c0_91 = arith.constant 0 : index
    %c0_92 = arith.constant 0 : index
    %69 = vector.load %arg6[%c0_89, %c0_90, %c0_91, %c0_92] : memref<1x4x16x128xbf16, #tpu.memory_space<vmem>>, vector<1x4x16x128xbf16>
    %70 = vector.shape_cast %69 : vector<1x4x16x128xbf16> to vector<4x16x128xbf16>
    %71 = vector.shape_cast %68 : vector<4x16x128xbf16> to vector<1x4x16x128xbf16>
    tpu.vector_store %arg6[%c0_89, %c0_90, %c0_91, %c0_92], %71 {strides = array<i32>} : memref<1x4x16x128xbf16, #tpu.memory_space<vmem>>, vector<1x4x16x128xbf16>,
    return
  }
  func.func @transform_0(%arg0: i32, %arg1: i32, %arg2: i32) -> (i32, i32, i32, i32, i32) {
    %c0_i32 = arith.constant 0 : i32
    %c0_i32_0 = arith.constant 0 : i32
    %c0_i32_1 = arith.constant 0 : i32
    %c0_i32_2 = arith.constant 0 : i32
    return %arg0, %arg1, %c0_i32, %c0_i32_0, %c0_i32_1 : i32, i32, i32, i32, i32
  }
  func.func @transform_1(%arg0: i32, %arg1: i32, %arg2: i32) -> (i32, i32, i32, i32) {
    %c0_i32 = arith.constant 0 : i32
    %c0_i32_0 = arith.constant 0 : i32
    %c0_i32_1 = arith.constant 0 : i32
    %c0_i32_2 = arith.constant 0 : i32
    return %c0_i32, %c0_i32_0, %c0_i32_1, %arg2 : i32, i32, i32, i32
  }
  func.func @transform_2(%arg0: i32, %arg1: i32, %arg2: i32) -> (i32, i32) {
    %c0_i32 = arith.constant 0 : i32
    %c0_i32_0 = arith.constant 0 : i32
    return %c0_i32, %arg2 : i32, i32
  }
  func.func @transform_3(%arg0: i32, %arg1: i32, %arg2: i32) -> (i32, i32, i32, i32) {
    %c0_i32 = arith.constant 0 : i32
    %c0_i32_0 = arith.constant 0 : i32
    return %arg0, %arg1, %c0_i32, %arg2 : i32, i32, i32, i32
  }
}

</mosaic_0001>

<llo_original>
// kernel: tpu_custom_call.1
$region0: #{tpu_custom_call.1}
  #allocation0 [shape = 'u32[]', space=smem, size = 0x4, offset = 0x4, fixed_abs, tag = 'smem constant byte address 0x4 - core index']
  #allocation1 [shape = 'u32[72,128]{1,0:T(1,128)}', space=vmem, size = 0x9000, scoped, tag = 'internal scratch']
  %s0 = inlined_call_operand.vmem [shape: bf16[1,4,6,18,64], index: 0, kind: input, shape index: {}]
  %s1 = inlined_call_operand.hbm [shape: bf16[3,3,64,256], index: 1, kind: input, shape index: {}]
  %s2 = inlined_call_operand.vmem [shape: f32[1,256], index: 2, kind: input, shape index: {}]
  %s3 = inlined_call_operand.hbm [shape: bf16[1,16,16,256], index: 3, kind: output, shape index: {}]
  %s4 = sld [smem:[#allocation0]]
  $region49: #{tpu_custom_call.1} parent=0
    _
  %s6 = ssub.s32 1, %s4
  %s7 = scalar_select 0, %s6, %s4
  $region1: #{tpu_custom_call.1} parent=0
    #allocation2 [shape = 'u8[294912]{0}', space=vmem, size = 0x48000, scoped, tag = 'input window, operand 1']
    #allocation3 [shape = 's32[2]{0}', space=sflag, size = 0x8, scoped, tag = 'scoped memory for tpu_custom_call.1']
    #allocation4 [shape = 's32[2]{0}', space=sflag, size = 0x8, scoped, tag = 'scoped memory for tpu_custom_call.1']
    #allocation5 [shape = 'u8[32768]{0}', space=vmem, size = 0x8000, scoped, tag = 'output window, operand 0']
    %8 = vsyncpa [#allocation3], 0
    %s9 = scalar_lea.sflag [#allocation3], 1
    %10 = vsyncpa %s9, 0
    %11 = vsyncpa [#allocation4], 0
    %s12 = scalar_lea.sflag [#allocation4], 1
    %13 = vsyncpa %s12, 0
    loop: start=0, step=1, limit=10
    $region2: #{tpu_custom_call.1} parent=1 // loop_pre_header
      _
    $region3: #{tpu_custom_call.1} parent=1 // loop_header
      %s15 = sphi 0, %s19
      %p16 = scmp.ge.s32.totalorder %s15, 10
      %s22 = sphi 0, %s41
      %s23 = sphi 0, %s37
      %s24 = sphi 0, %s33
      %s25 = sphi 0, %s22
      %s26 = sphi 0, %s23
      %s27 = sphi 0, %s24
      %s28 = sphi 0, %s25
      %s29 = sphi 0, %s26
      %s30 = sphi 0, %s27
      %s46 = sphi 0, %s48
      %s49 = sphi 0, %s46
      %s50 = sphi 0, %s49
      %s66 = sphi 0, %s50
      %s72 = sphi 0, %s74
      %s75 = sphi 0, %s72
      %s76 = sphi 0, %s75
      %s92 = sphi 0, %s76
      %s98 = sphi 0, %s100
      %s101 = sphi 0, %s98
      %s102 = sphi 0, %s101
      %s118 = sphi 0, %s102
      %s128 = sphi 0, %s130
      %s131 = sphi 0, %s128
      %s132 = sphi 0, %s131
      %s148 = sphi 0, %s132
    $region4: #{tpu_custom_call.1} parent=1 // loop_header_branch
      %18 = sbr.rel (%p16) target = $region8
    $region5: #{tpu_custom_call.1} parent=1 // loop_body
      %s20 = ssub.s32 %s15, 1
      %s21 = ssub.s32 %s15, 2
      %s31 = sadd.s32 1, %s24
      %p32 = scmp.ge.s32.totalorder %s31, 2
      %s33 = scalar_select %p32, 0, %s31
      %s34 = sadd.s32 1, %s23
      %s35 = scalar_select %p32, %s34, %s23
      %p36 = scmp.ge.s32.totalorder %s35, 4
      %s37 = scalar_select %p36, 0, %s35
      %s38 = sadd.s32 1, %s22
      %s39 = scalar_select %p36, %s38, %s22
      %p40 = scmp.ge.s32.totalorder %s39, 1
      %s41 = scalar_select %p40, 0, %s39
      %s42 = ssub.s32 %s22, %s41
      %s43 = ssub.s32 %s23, %s37
      %s44 = sor.u32 %s42, %s43
      %p45 = scmp.eq.s32.totalorder %s44, 0
      %s47 = sadd.s32 %s46, 1
      %s48 = scalar_select %p45, %s46, %s47
      %p51 = pneg %p45
      %p52 = scmp.eq.s32.totalorder %s15, 7
      %p53 = por %p51, %p52
      %p54 = scmp.ne.s32.totalorder %s46, %s49
      %p55 = scmp.eq.s32.totalorder %s15, 0
      %p56 = por %p54, %p55
      %p57 = scmp.ne.s32.totalorder %s46, %s49
      %p58 = scmp.eq.s32.totalorder %s20, 7
      %p59 = por %p57, %p58
      %p60 = scmp.ne.s32.totalorder %s49, %s50
      %p61 = scmp.eq.s32.totalorder %s20, 0
      %p62 = por %p60, %p61
      %p63 = scmp.ne.s32.totalorder %s49, %s50
      %p64 = scmp.eq.s32.totalorder %s21, 7
      %p65 = por %p63, %p64
      %p67 = scmp.ne.s32.totalorder %s50, %s66
      %p68 = scmp.eq.s32.totalorder %s21, 0
      %p69 = por %p67, %p68
      %s70 = ssub.s32 %s24, %s33
      %p71 = scmp.eq.s32.totalorder %s70, 0
      %s73 = sadd.s32 %s72, 1
      %s74 = scalar_select %p71, %s72, %s73
      %p77 = pneg %p71
      %p78 = scmp.eq.s32.totalorder %s15, 7
      %p79 = por %p77, %p78
      %p80 = scmp.ne.s32.totalorder %s72, %s75
      %p81 = scmp.eq.s32.totalorder %s15, 0
      %p82 = por %p80, %p81
      %p83 = scmp.ne.s32.totalorder %s72, %s75
      %p84 = scmp.eq.s32.totalorder %s20, 7
      %p85 = por %p83, %p84
      %p86 = scmp.ne.s32.totalorder %s75, %s76
      %p87 = scmp.eq.s32.totalorder %s20, 0
      %p88 = por %p86, %p87
      %p89 = scmp.ne.s32.totalorder %s75, %s76
      %p90 = scmp.eq.s32.totalorder %s21, 7
      %p91 = por %p89, %p90
      %p93 = scmp.ne.s32.totalorder %s76, %s92
      %p94 = scmp.eq.s32.totalorder %s21, 0
      %p95 = por %p93, %p94
      %s96 = ssub.s32 %s24, %s33
      %p97 = scmp.eq.s32.totalorder %s96, 0
      %s99 = sadd.s32 %s98, 1
      %s100 = scalar_select %p97, %s98, %s99
      %p103 = pneg %p97
      %p104 = scmp.eq.s32.totalorder %s15, 7
      %p105 = por %p103, %p104
      %p106 = scmp.ne.s32.totalorder %s98, %s101
      %p107 = scmp.eq.s32.totalorder %s15, 0
      %p108 = por %p106, %p107
      %p109 = scmp.ne.s32.totalorder %s98, %s101
      %p110 = scmp.eq.s32.totalorder %s20, 7
      %p111 = por %p109, %p110
      %p112 = scmp.ne.s32.totalorder %s101, %s102
      %p113 = scmp.eq.s32.totalorder %s20, 0
      %p114 = por %p112, %p113
      %p115 = scmp.ne.s32.totalorder %s101, %s102
      %p116 = scmp.eq.s32.totalorder %s21, 7
      %p117 = por %p115, %p116
      %p119 = scmp.ne.s32.totalorder %s102, %s118
      %p120 = scmp.eq.s32.totalorder %s21, 0
      %p121 = por %p119, %p120
      %s122 = ssub.s32 %s22, %s41
      %s123 = ssub.s32 %s23, %s37
      %s124 = sor.u32 %s122, %s123
      %s125 = ssub.s32 %s24, %s33
      %s126 = sor.u32 %s124, %s125
      %p127 = scmp.eq.s32.totalorder %s126, 0
      %s129 = sadd.s32 %s128, 1
      %s130 = scalar_select %p127, %s128, %s129
      %p133 = pneg %p127
      %p134 = scmp.eq.s32.totalorder %s15, 7
      %p135 = por %p133, %p134
      %p136 = scmp.ne.s32.totalorder %s128, %s131
      %p137 = scmp.eq.s32.totalorder %s15, 0
      %p138 = por %p136, %p137
      %p139 = scmp.ne.s32.totalorder %s128, %s131
      %p140 = scmp.eq.s32.totalorder %s20, 7
      %p141 = por %p139, %p140
      %p142 = scmp.ne.s32.totalorder %s131, %s132
      %p143 = scmp.eq.s32.totalorder %s20, 0
      %p144 = por %p142, %p143
      %p145 = scmp.ne.s32.totalorder %s131, %s132
      %p146 = scmp.eq.s32.totalorder %s21, 7
      %p147 = por %p145, %p146
      %p149 = scmp.ne.s32.totalorder %s132, %s148
      %p150 = scmp.eq.s32.totalorder %s21, 0
      %p151 = por %p149, %p150
      %p152 = scmp.le.s32.totalorder 1, %s15
      %p153 = scmp.lt.s32.totalorder %s15, 9
      %p154 = pnand %p152, %p153
      %p155 = pneg %p154
      // Predicated region
      $region9: #{tpu_custom_call.1} parent=5 // pred_check
        _
      $region10: #{tpu_custom_call.1} parent=5 // pred_check_branch
        %157 = sbr.rel (%p154) target = $region12
      $region11: #{tpu_custom_call.1} parent=5 // pred_region
        %s158 = ssub.s32 %s15, 1
      $region12: #{tpu_custom_call.1} parent=5 // pred_fallthru
        _
      %p159 = scmp.lt.s32.totalorder %s15, 8
      // Predicated region
      $region13: #{tpu_custom_call.1} parent=5 // pred_check
        %p160 = pneg %p159
      $region14: #{tpu_custom_call.1} parent=5 // pred_check_branch
        %162 = sbr.rel (%p160) target = $region16
      $region15: #{tpu_custom_call.1} parent=5 // pred_region
        // Predicated region
        $region17: #{tpu_custom_call.1} parent=15 // pred_check
          %p163 = pneg %p56
        $region18: #{tpu_custom_call.1} parent=15 // pred_check_branch
          %165 = sbr.rel (%p163) target = $region20
        $region19: #{tpu_custom_call.1} parent=15 // pred_region
          %p166 = scmp.lt.s32.totalorder %s22, 0
          %s167 = scalar_select %p166, %s22, 0
          %p168 = scmp.lt.s32.totalorder %s23, 3
          %s169 = scalar_select %p168, %s23, 3
          %s170 = smul.addr %s169, 18
          %s171 = smul.addr %s167, 72
          %s172 = sadd.s32 %s170, %s171
          %s173 = smul.addr %s172, 4
          %s174 = scalar_lea.vmem %s0, %s173
        $region20: #{tpu_custom_call.1} parent=15 // pred_fallthru
          _
        // Predicated region
        $region21: #{tpu_custom_call.1} parent=15 // pred_check
          %p175 = pneg %p82
        $region22: #{tpu_custom_call.1} parent=15 // pred_check_branch
          %177 = sbr.rel (%p175) target = $region24
        $region23: #{tpu_custom_call.1} parent=15 // pred_region
          %s178 = sand.u32 %s72, 1
          %s179 = scalar_lea.sflag [#allocation3], %s178
          %s180 = sand.u32 %s72, 1
          %s181 = smul.addr %s180, 288
          %s182 = scalar_lea.vmem [#allocation2], %s181
          %184 = vsyncadd %s179, 0
          %s185 = smul.addr %s24, 4
          %s186 = scalar_lea.hbm %s1, %s185
          %s187 = sshll.u32 %s186, 4
          %s188 = int_to_ptr.hbm [resolvable:$true] %s187
          %s189 = sshll.u32 %s182, 4
          %s190 = int_to_ptr.vmem [resolvable:$true] %s189
          %195 = dma.hbm_to_vmem [thread:$0]  %s188, 4608, %s190, %s179, 128, 64, 4
        $region24: #{tpu_custom_call.1} parent=15 // pred_fallthru
          _
        // Predicated region
        $region25: #{tpu_custom_call.1} parent=15 // pred_check
          %p196 = pneg %p108
        $region26: #{tpu_custom_call.1} parent=15 // pred_check_branch
          %198 = sbr.rel (%p196) target = $region28
        $region27: #{tpu_custom_call.1} parent=15 // pred_region
          %p199 = scmp.lt.s32.totalorder %s24, 1
          %s200 = scalar_select %p199, %s24, 1
          %s201 = scalar_lea.vmem %s2, %s200
        $region28: #{tpu_custom_call.1} parent=15 // pred_fallthru
          _
      $region16: #{tpu_custom_call.1} parent=5 // pred_fallthru
        _
      %p202 = scmp.le.s32.totalorder 1, %s15
      %p203 = scmp.lt.s32.totalorder %s15, 9
      %p204 = pnand %p202, %p203
      %p205 = pneg %p204
      // Predicated region
      $region29: #{tpu_custom_call.1} parent=5 // pred_check
        _
      $region30: #{tpu_custom_call.1} parent=5 // pred_check_branch
        %207 = sbr.rel (%p204) target = $region32
      $region31: #{tpu_custom_call.1} parent=5 // pred_region
        %s208 = ssub.s32 %s15, 1
        %s209 = sand.u32 %s75, 1
        %s210 = scalar_lea.sflag [#allocation3], %s209
        %s211 = sand.u32 %s75, 1
        %s212 = smul.addr %s211, 288
        %s213 = scalar_lea.vmem [#allocation2], %s212
        // Predicated region
        $region33: #{tpu_custom_call.1} parent=31 // pred_check
          %p214 = pneg %p88
        $region34: #{tpu_custom_call.1} parent=31 // pred_check_branch
          %216 = sbr.rel (%p214) target = $region36
        $region35: #{tpu_custom_call.1} parent=31 // pred_region
          %218 = dma.done %s210, 4608
        $region36: #{tpu_custom_call.1} parent=31 // pred_fallthru
          _
        %p219 = scmp.lt.s32.totalorder %s25, 0
        %s220 = scalar_select %p219, %s25, 0
        %p221 = scmp.lt.s32.totalorder %s26, 3
        %s222 = scalar_select %p221, %s26, 3
        %s223 = smul.addr %s222, 18
        %s224 = smul.addr %s220, 72
        %s225 = sadd.s32 %s223, %s224
        %s226 = smul.addr %s225, 4
        %s227 = scalar_lea.vmem %s0, %s226
        %p228 = pneg %p62
        %p229 = pneg %p59
        %s230 = sand.u32 %s75, 1
        %s231 = scalar_lea.sflag [#allocation3], %s230
        %s232 = sand.u32 %s75, 1
        %s233 = smul.addr %s232, 288
        %s234 = scalar_lea.vmem [#allocation2], %s233
        %p235 = pneg %p88
        %p236 = pneg %p85
        %p237 = scmp.lt.s32.totalorder %s27, 1
        %s238 = scalar_select %p237, %s27, 1
        %s239 = scalar_lea.vmem %s2, %s238
        %p240 = pneg %p114
        %p241 = pneg %p111
        %p242 = pneg %p144
        %p243 = pneg %p141
        %s244 = sand.u32 %s131, 1
        %s245 = scalar_lea.sflag [#allocation4], %s244
        %s246 = sand.u32 %s131, 1
        %s247 = smul.addr %s246, 32
        %s248 = scalar_lea.vmem [#allocation5], %s247
        %p249 = scmp.lt.s32.totalorder %s25, 0
        %s250 = scalar_select %p249, %s25, 0
        %p251 = scmp.lt.s32.totalorder %s26, 3
        %s252 = scalar_select %p251, %s26, 3
        %s253 = smul.addr %s252, 18
        %s254 = smul.addr %s250, 72
        %s255 = sadd.s32 %s253, %s254
        %s256 = smul.addr %s255, 4
        %s257 = scalar_lea.vmem %s0, %s256
        %p258 = scmp.lt.s32.totalorder %s27, 1
        %s259 = scalar_select %p258, %s27, 1
        %s260 = scalar_lea.vmem %s2, %s259
        %s261 = smul.u32 4, %s26
        %v263 = vld [vmem:[%s257] sm:$0xf]
        %v264 = vld [vmem:[%s257 + $0x4] sm:$0xf]
        %v265 = vld [vmem:[%s257 + $0xc] sm:$0xf]
        %v266 = vld [vmem:[%s257 + $0x10] sm:$0xf]
        %v267 = vld [vmem:[%s257 + $0x18] sm:$0xf]
        %v268 = vld [vmem:[%s257 + $0x1c] sm:$0xf]
        %v269 = vld [vmem:[%s257 + $0x24] sm:$0xf]
        %v270 = vld [vmem:[%s257 + $0x28] sm:$0xf]
        %v271 = vld [vmem:[%s213] sm:$0xf]
        %v272 = vld [vmem:[%s213 + $0x4] sm:$0xf]
        %v273 = vld [vmem:[%s213 + $0x8] sm:$0xf]
        %v274 = vld [vmem:[%s213 + $0xc] sm:$0xf]
        %v275 = vld [vmem:[%s213 + $0x10] sm:$0xf]
        %v276 = vld [vmem:[%s213 + $0x14] sm:$0xf]
        %v277 = vld [vmem:[%s213 + $0x18] sm:$0xf]
        %v278 = vld [vmem:[%s213 + $0x1c] sm:$0xf]
        %v279 = vld [vmem:[%s257 + $0x8] sm:$0x1]
        %v280 = vld [vmem:[%s257 + $0x14] sm:$0x1]
        %v281 = vld [vmem:[%s257 + $0x20] sm:$0x1]
        %v282 = vld [vmem:[%s257 + $0x2c] sm:$0x1]
        %vm283 = vsmask.f32 3328
        %vm284 = vsmask.f32 7440
        %vm285 = vmor %vm283, %vm284
        %v287 = vshrl.u32 %v263, 16
        %v289 = vrot.slane %v287, 4
        %v290 = vshll.u32 %v263, 16
        %v292 = vrot.slane %v290, 5
        %v293 = vor.u32 %v289, %v292
        %v294 = vrot.slane %v293, 4
        %v296 = vshll.u32 %v264, 16
        %v298 = vrot.slane %v296, 5
        %v299 = vsel %vm285, %v294, %v298
        %v300 = vshrl.u32 %v264, 16
        %v302 = vrot.slane %v300, 4
        %v303 = vor.u32 %v302, %v298
        %v304 = vrot.slane %v303, 4
        %v306 = vshll.u32 %v279, 16
        %v308 = vrot.slane %v306, 5
        %v309 = vsel %vm285, %v304, %v308
        %v311 = vshrl.u32 %v265, 16
        %v313 = vrot.slane %v311, 4
        %v314 = vshll.u32 %v265, 16
        %v316 = vrot.slane %v314, 5
        %v317 = vor.u32 %v313, %v316
        %v318 = vrot.slane %v317, 4
        %v320 = vshll.u32 %v266, 16
        %v322 = vrot.slane %v320, 5
        %v323 = vsel %vm285, %v318, %v322
        %v324 = vshrl.u32 %v266, 16
        %v326 = vrot.slane %v324, 4
        %v327 = vor.u32 %v326, %v322
        %v328 = vrot.slane %v327, 4
        %v330 = vshll.u32 %v280, 16
        %v332 = vrot.slane %v330, 5
        %v333 = vsel %vm285, %v328, %v332
        %v335 = vshrl.u32 %v267, 16
        %v337 = vrot.slane %v335, 4
        %v338 = vshll.u32 %v267, 16
        %v340 = vrot.slane %v338, 5
        %v341 = vor.u32 %v337, %v340
        %v342 = vrot.slane %v341, 4
        %v344 = vshll.u32 %v268, 16
        %v346 = vrot.slane %v344, 5
        %v347 = vsel %vm285, %v342, %v346
        %v348 = vshrl.u32 %v268, 16
        %v350 = vrot.slane %v348, 4
        %v351 = vor.u32 %v350, %v346
        %v352 = vrot.slane %v351, 4
        %v354 = vshll.u32 %v281, 16
        %v356 = vrot.slane %v354, 5
        %v357 = vsel %vm285, %v352, %v356
        %v359 = vshrl.u32 %v269, 16
        %v361 = vrot.slane %v359, 4
        %v362 = vshll.u32 %v269, 16
        %v364 = vrot.slane %v362, 5
        %v365 = vor.u32 %v361, %v364
        %v366 = vrot.slane %v365, 4
        %v368 = vshll.u32 %v270, 16
        %v370 = vrot.slane %v368, 5
        %v371 = vsel %vm285, %v366, %v370
        %v372 = vshrl.u32 %v270, 16
        %v374 = vrot.slane %v372, 4
        %v375 = vor.u32 %v374, %v370
        %v376 = vrot.slane %v375, 4
        %v378 = vshll.u32 %v282, 16
        %v380 = vrot.slane %v378, 5
        %v381 = vsel %vm285, %v376, %v380
        %s382 = scalar_lea.vmem %s213, 32 [#allocation2]
        %v383 = vld [vmem:[%s382] sm:$0xf]
        %v384 = vld [vmem:[%s382 + $0x4] sm:$0xf]
        %v385 = vld [vmem:[%s382 + $0x8] sm:$0xf]
        %v386 = vld [vmem:[%s382 + $0xc] sm:$0xf]
        %v387 = vld [vmem:[%s382 + $0x10] sm:$0xf]
        %v388 = vld [vmem:[%s382 + $0x14] sm:$0xf]
        %v389 = vld [vmem:[%s382 + $0x18] sm:$0xf]
        %v390 = vld [vmem:[%s382 + $0x1c] sm:$0xf]
        %v391 = vunpack.c.l.b16 %v299
        %v392 = vunpack.c.l.b16 %v309
        %v393 = vunpack.c.l.b16 %v323
        %v394 = vunpack.c.l.b16 %v333
        %v395 = vunpack.c.l.b16 %v347
        %v396 = vunpack.c.l.b16 %v357
        %v397 = vunpack.c.l.b16 %v371
        %v398 = vunpack.c.l.b16 %v381
        %v399 = vpack.c.b16 %v392, %v391
        %v400 = vpack.c.b16 %v394, %v393
        %v401 = vpack.c.b16 %v396, %v395
        %v402 = vpack.c.b16 %v398, %v397
        %v411 = vunpack.c.l.b16 %v383
        %v412 = vunpack.c.l.b16 %v384
        %v413 = vunpack.c.l.b16 %v385
        %v414 = vunpack.c.l.b16 %v386
        %v415 = vunpack.c.l.b16 %v387
        %v416 = vunpack.c.l.b16 %v388
        %v417 = vunpack.c.l.b16 %v389
        %v418 = vunpack.c.l.b16 %v390
        %v419 = vpack.c.b16 %v412, %v411
        %v420 = vpack.c.b16 %v414, %v413
        %v421 = vpack.c.b16 %v416, %v415
        %v422 = vpack.c.b16 %v418, %v417
        %vm427 = vcmask 523264
        %v429 = vsel %vm427, %v399, 0
        %v432 = vsel %vm427, %v400, 0
        %v435 = vsel %vm427, %v401, 0
        %v438 = vsel %vm427, %v402, 0
        %440 = vmatpush.bf16.msra.mxu0 0
        %441 = vmatpush.bf16.msra.mxu0 0
        %442 = vmatpush.bf16.msra.mxu0 0
        %443 = vmatpush.bf16.msra.mxu0 0
        %444 = vmatpush.bf16.msra.mxu0 %v422
        %445 = vmatpush.bf16.msra.mxu0 %v421
        %446 = vmatpush.bf16.msra.mxu0 %v420
        %447 = vmatpush.bf16.msra.mxu0 %v419
        %448 = vmatmul.bf16.gmra.mxu0 %v429
        %v449 = vpop.f32.mrf.mxu0
        %v450 = vadd.f32 0.0, %v449
        %v451 = vpop.f32.mrf.mxu0
        %v452 = vadd.f32 0.0, %v451
        %453 = vmatmul.bf16.gmra.mxu0 %v432
        %v454 = vpop.f32.mrf.mxu0
        %v455 = vadd.f32 0.0, %v454
        %v456 = vpop.f32.mrf.mxu0
        %v457 = vadd.f32 0.0, %v456
        %458 = vmatmul.bf16.gmra.mxu0 %v435
        %v459 = vpop.f32.mrf.mxu0
        %v460 = vadd.f32 0.0, %v459
        %v461 = vpop.f32.mrf.mxu0
        %v462 = vadd.f32 0.0, %v461
        %463 = vmatmul.bf16.gmra.mxu0 %v438
        %v464 = vpop.f32.mrf.mxu0
        %v465 = vadd.f32 0.0, %v464
        %v466 = vpop.f32.mrf.mxu0
        %v467 = vadd.f32 0.0, %v466
        %468 = vdwg.mxu0
        %v477 = vunpack.c.l.b16 %v263
        %v478 = vunpack.c.l.b16 %v264
        %v479 = vunpack.c.l.b16 %v265
        %v480 = vunpack.c.l.b16 %v266
        %v481 = vunpack.c.l.b16 %v267
        %v482 = vunpack.c.l.b16 %v268
        %v483 = vunpack.c.l.b16 %v269
        %v484 = vunpack.c.l.b16 %v270
        %v485 = vpack.c.b16 %v478, %v477
        %v486 = vpack.c.b16 %v480, %v479
        %v487 = vpack.c.b16 %v482, %v481
        %v488 = vpack.c.b16 %v484, %v483
        %v497 = vunpack.c.l.b16 %v271
        %v498 = vunpack.c.l.b16 %v272
        %v499 = vunpack.c.l.b16 %v273
        %v500 = vunpack.c.l.b16 %v274
        %v501 = vunpack.c.l.b16 %v275
        %v502 = vunpack.c.l.b16 %v276
        %v503 = vunpack.c.l.b16 %v277
        %v504 = vunpack.c.l.b16 %v278
        %v505 = vpack.c.b16 %v498, %v497
        %v506 = vpack.c.b16 %v500, %v499
        %v507 = vpack.c.b16 %v502, %v501
        %v508 = vpack.c.b16 %v504, %v503
        %v514 = vsel %vm427, %v485, 0
        %v517 = vsel %vm427, %v486, 0
        %v520 = vsel %vm427, %v487, 0
        %v523 = vsel %vm427, %v488, 0
        %525 = vmatpush.bf16.msra.mxu0 0
        %526 = vmatpush.bf16.msra.mxu0 0
        %527 = vmatpush.bf16.msra.mxu0 0
        %528 = vmatpush.bf16.msra.mxu0 0
        %529 = vmatpush.bf16.msra.mxu0 %v508
        %530 = vmatpush.bf16.msra.mxu0 %v507
        %531 = vmatpush.bf16.msra.mxu0 %v506
        %532 = vmatpush.bf16.msra.mxu0 %v505
        %533 = vmatmul.bf16.gmra.mxu0 %v514
        %v534 = vpop.f32.mrf.mxu0
        %v535 = vadd.f32 %v450, %v534
        %v536 = vpop.f32.mrf.mxu0
        %v537 = vadd.f32 %v452, %v536
        %538 = vmatmul.bf16.gmra.mxu0 %v517
        %v539 = vpop.f32.mrf.mxu0
        %v540 = vadd.f32 %v455, %v539
        %v541 = vpop.f32.mrf.mxu0
        %v542 = vadd.f32 %v457, %v541
        %543 = vmatmul.bf16.gmra.mxu0 %v520
        %v544 = vpop.f32.mrf.mxu0
        %v545 = vadd.f32 %v460, %v544
        %v546 = vpop.f32.mrf.mxu0
        %v547 = vadd.f32 %v462, %v546
        %548 = vmatmul.bf16.gmra.mxu0 %v523
        %v549 = vpop.f32.mrf.mxu0
        %v550 = vadd.f32 %v465, %v549
        %v551 = vpop.f32.mrf.mxu0
        %v552 = vadd.f32 %v467, %v551
        %553 = vdwg.mxu0
        %v554 = vld [vmem:[%s257] sm:$0xe]
        %v555 = vld [vmem:[%s257 + $0xc] sm:$0xe]
        %v556 = vld [vmem:[%s257 + $0x18] sm:$0xe]
        %v557 = vld [vmem:[%s257 + $0x24] sm:$0xe]
        %vm566 = vcmask 1042432
        %vm567 = vcmask 1046532
        %vm568 = vmor %vm566, %vm567
        %v569 = vrot.slane %v554, 5
        %v570 = vrot.slane %v569, 4
        %v571 = vrot.slane %v264, 5
        %v572 = vsel %vm568, %v570, %v571
        %v573 = vrot.slane %v571, 4
        %v574 = vrot.slane %v279, 5
        %v575 = vsel %vm568, %v573, %v574
        %v576 = vrot.slane %v555, 5
        %v577 = vrot.slane %v576, 4
        %v578 = vrot.slane %v266, 5
        %v579 = vsel %vm568, %v577, %v578
        %v580 = vrot.slane %v578, 4
        %v581 = vrot.slane %v280, 5
        %v582 = vsel %vm568, %v580, %v581
        %v583 = vrot.slane %v556, 5
        %v584 = vrot.slane %v583, 4
        %v585 = vrot.slane %v268, 5
        %v586 = vsel %vm568, %v584, %v585
        %v587 = vrot.slane %v585, 4
        %v588 = vrot.slane %v281, 5
        %v589 = vsel %vm568, %v587, %v588
        %v590 = vrot.slane %v557, 5
        %v591 = vrot.slane %v590, 4
        %v592 = vrot.slane %v270, 5
        %v593 = vsel %vm568, %v591, %v592
        %v594 = vrot.slane %v592, 4
        %v595 = vrot.slane %v282, 5
        %v596 = vsel %vm568, %v594, %v595
        %s597 = scalar_lea.vmem %s213, 64 [#allocation2]
        %v598 = vld [vmem:[%s597] sm:$0xf]
        %v599 = vld [vmem:[%s597 + $0x4] sm:$0xf]
        %v600 = vld [vmem:[%s597 + $0x8] sm:$0xf]
        %v601 = vld [vmem:[%s597 + $0xc] sm:$0xf]
        %v602 = vld [vmem:[%s597 + $0x10] sm:$0xf]
        %v603 = vld [vmem:[%s597 + $0x14] sm:$0xf]
        %v604 = vld [vmem:[%s597 + $0x18] sm:$0xf]
        %v605 = vld [vmem:[%s597 + $0x1c] sm:$0xf]
        %v606 = vunpack.c.l.b16 %v572
        %v607 = vunpack.c.l.b16 %v575
        %v608 = vunpack.c.l.b16 %v579
        %v609 = vunpack.c.l.b16 %v582
        %v610 = vunpack.c.l.b16 %v586
        %v611 = vunpack.c.l.b16 %v589
        %v612 = vunpack.c.l.b16 %v593
        %v613 = vunpack.c.l.b16 %v596
        %v614 = vpack.c.b16 %v607, %v606
        %v615 = vpack.c.b16 %v609, %v608
        %v616 = vpack.c.b16 %v611, %v610
        %v617 = vpack.c.b16 %v613, %v612
        %v626 = vunpack.c.l.b16 %v598
        %v627 = vunpack.c.l.b16 %v599
        %v628 = vunpack.c.l.b16 %v600
        %v629 = vunpack.c.l.b16 %v601
        %v630 = vunpack.c.l.b16 %v602
        %v631 = vunpack.c.l.b16 %v603
        %v632 = vunpack.c.l.b16 %v604
        %v633 = vunpack.c.l.b16 %v605
        %v634 = vpack.c.b16 %v627, %v626
        %v635 = vpack.c.b16 %v629, %v628
        %v636 = vpack.c.b16 %v631, %v630
        %v637 = vpack.c.b16 %v633, %v632
        %v643 = vsel %vm427, %v614, 0
        %v646 = vsel %vm427, %v615, 0
        %v649 = vsel %vm427, %v616, 0
        %v652 = vsel %vm427, %v617, 0
        %654 = vmatpush.bf16.msra.mxu0 0
        %655 = vmatpush.bf16.msra.mxu0 0
        %656 = vmatpush.bf16.msra.mxu0 0
        %657 = vmatpush.bf16.msra.mxu0 0
        %658 = vmatpush.bf16.msra.mxu0 %v637
        %659 = vmatpush.bf16.msra.mxu0 %v636
        %660 = vmatpush.bf16.msra.mxu0 %v635
        %661 = vmatpush.bf16.msra.mxu0 %v634
        %662 = vmatmul.bf16.gmra.mxu0 %v643
        %v663 = vpop.f32.mrf.mxu0
        %v664 = vadd.f32 0.0, %v663
        %v665 = vpop.f32.mrf.mxu0
        %v666 = vadd.f32 0.0, %v665
        %667 = vmatmul.bf16.gmra.mxu0 %v646
        %v668 = vpop.f32.mrf.mxu0
        %v669 = vadd.f32 0.0, %v668
        %v670 = vpop.f32.mrf.mxu0
        %v671 = vadd.f32 0.0, %v670
        %672 = vmatmul.bf16.gmra.mxu0 %v649
        %v673 = vpop.f32.mrf.mxu0
        %v674 = vadd.f32 0.0, %v673
        %v675 = vpop.f32.mrf.mxu0
        %v676 = vadd.f32 0.0, %v675
        %677 = vmatmul.bf16.gmra.mxu0 %v652
        %v678 = vpop.f32.mrf.mxu0
        %v679 = vadd.f32 0.0, %v678
        %v680 = vpop.f32.mrf.mxu0
        %v681 = vadd.f32 0.0, %v680
        %682 = vdwg.mxu0
        %v683 = vadd.f32 %v535, %v664
        %v684 = vadd.f32 %v537, %v666
        %v685 = vadd.f32 %v540, %v669
        %v686 = vadd.f32 %v542, %v671
        %v687 = vadd.f32 %v545, %v674
        %v688 = vadd.f32 %v547, %v676
        %v689 = vadd.f32 %v550, %v679
        %v690 = vadd.f32 %v552, %v681
        %s691 = scalar_lea.vmem %s257, 12
        %v692 = vld [vmem:[%s691] sm:$0xf]
        %v693 = vld [vmem:[%s691 + $0x4] sm:$0xf]
        %v694 = vld [vmem:[%s691 + $0xc] sm:$0xf]
        %v695 = vld [vmem:[%s691 + $0x10] sm:$0xf]
        %v696 = vld [vmem:[%s691 + $0x18] sm:$0xf]
        %v697 = vld [vmem:[%s691 + $0x1c] sm:$0xf]
        %v698 = vld [vmem:[%s691 + $0x24] sm:$0xf]
        %v699 = vld [vmem:[%s691 + $0x28] sm:$0xf]
        %s700 = scalar_lea.vmem %s213, 96 [#allocation2]
        %v701 = vld [vmem:[%s700] sm:$0xf]
        %v702 = vld [vmem:[%s700 + $0x4] sm:$0xf]
        %v703 = vld [vmem:[%s700 + $0x8] sm:$0xf]
        %v704 = vld [vmem:[%s700 + $0xc] sm:$0xf]
        %v705 = vld [vmem:[%s700 + $0x10] sm:$0xf]
        %v706 = vld [vmem:[%s700 + $0x14] sm:$0xf]
        %v707 = vld [vmem:[%s700 + $0x18] sm:$0xf]
        %v708 = vld [vmem:[%s700 + $0x1c] sm:$0xf]
        %v717 = vunpack.c.l.b16 %v692
        %v718 = vunpack.c.l.b16 %v693
        %v719 = vunpack.c.l.b16 %v694
        %v720 = vunpack.c.l.b16 %v695
        %v721 = vunpack.c.l.b16 %v696
        %v722 = vunpack.c.l.b16 %v697
        %v723 = vunpack.c.l.b16 %v698
        %v724 = vunpack.c.l.b16 %v699
        %v725 = vpack.c.b16 %v718, %v717
        %v726 = vpack.c.b16 %v720, %v719
        %v727 = vpack.c.b16 %v722, %v721
        %v728 = vpack.c.b16 %v724, %v723
        %v737 = vunpack.c.l.b16 %v701
        %v738 = vunpack.c.l.b16 %v702
        %v739 = vunpack.c.l.b16 %v703
        %v740 = vunpack.c.l.b16 %v704
        %v741 = vunpack.c.l.b16 %v705
        %v742 = vunpack.c.l.b16 %v706
        %v743 = vunpack.c.l.b16 %v707
        %v744 = vunpack.c.l.b16 %v708
        %v745 = vpack.c.b16 %v738, %v737
        %v746 = vpack.c.b16 %v740, %v739
        %v747 = vpack.c.b16 %v742, %v741
        %v748 = vpack.c.b16 %v744, %v743
        %v754 = vsel %vm427, %v725, 0
        %v757 = vsel %vm427, %v726, 0
        %v760 = vsel %vm427, %v727, 0
        %v763 = vsel %vm427, %v728, 0
        %765 = vmatpush.bf16.msra.mxu0 0
        %766 = vmatpush.bf16.msra.mxu0 0
        %767 = vmatpush.bf16.msra.mxu0 0
        %768 = vmatpush.bf16.msra.mxu0 0
        %769 = vmatpush.bf16.msra.mxu0 %v748
        %770 = vmatpush.bf16.msra.mxu0 %v747
        %771 = vmatpush.bf16.msra.mxu0 %v746
        %772 = vmatpush.bf16.msra.mxu0 %v745
        %773 = vmatmul.bf16.gmra.mxu0 %v754
        %v774 = vpop.f32.mrf.mxu0
        %v775 = vadd.f32 0.0, %v774
        %v776 = vpop.f32.mrf.mxu0
        %v777 = vadd.f32 0.0, %v776
        %778 = vmatmul.bf16.gmra.mxu0 %v757
        %v779 = vpop.f32.mrf.mxu0
        %v780 = vadd.f32 0.0, %v779
        %v781 = vpop.f32.mrf.mxu0
        %v782 = vadd.f32 0.0, %v781
        %783 = vmatmul.bf16.gmra.mxu0 %v760
        %v784 = vpop.f32.mrf.mxu0
        %v785 = vadd.f32 0.0, %v784
        %v786 = vpop.f32.mrf.mxu0
        %v787 = vadd.f32 0.0, %v786
        %788 = vmatmul.bf16.gmra.mxu0 %v763
        %v789 = vpop.f32.mrf.mxu0
        %v790 = vadd.f32 0.0, %v789
        %v791 = vpop.f32.mrf.mxu0
        %v792 = vadd.f32 0.0, %v791
        %793 = vdwg.mxu0
        %v794 = vadd.f32 %v683, %v775
        %v795 = vadd.f32 %v684, %v777
        %v796 = vadd.f32 %v685, %v780
        %v797 = vadd.f32 %v686, %v782
        %v798 = vadd.f32 %v687, %v785
        %v799 = vadd.f32 %v688, %v787
        %v800 = vadd.f32 %v689, %v790
        %v801 = vadd.f32 %v690, %v792
        %v802 = vld [vmem:[%s691] sm:$0xf]
        %v803 = vld [vmem:[%s691 + $0x4] sm:$0xf]
        %v804 = vld [vmem:[%s691 + $0x8] sm:$0x1]
        %v805 = vld [vmem:[%s691 + $0xc] sm:$0xf]
        %v806 = vld [vmem:[%s691 + $0x10] sm:$0xf]
        %v807 = vld [vmem:[%s691 + $0x14] sm:$0x1]
        %v808 = vld [vmem:[%s691 + $0x18] sm:$0xf]
        %v809 = vld [vmem:[%s691 + $0x1c] sm:$0xf]
        %v810 = vld [vmem:[%s691 + $0x20] sm:$0x1]
        %v811 = vld [vmem:[%s691 + $0x24] sm:$0xf]
        %v812 = vld [vmem:[%s691 + $0x28] sm:$0xf]
        %v813 = vld [vmem:[%s691 + $0x2c] sm:$0x1]
        %v815 = vshrl.u32 %v802, 16
        %v817 = vrot.slane %v815, 4
        %v818 = vshll.u32 %v802, 16
        %v820 = vrot.slane %v818, 5
        %v821 = vor.u32 %v817, %v820
        %v822 = vrot.slane %v821, 4
        %v824 = vshll.u32 %v803, 16
        %v826 = vrot.slane %v824, 5
        %v827 = vsel %vm285, %v822, %v826
        %v828 = vshrl.u32 %v803, 16
        %v830 = vrot.slane %v828, 4
        %v831 = vor.u32 %v830, %v826
        %v832 = vrot.slane %v831, 4
        %v834 = vshll.u32 %v804, 16
        %v836 = vrot.slane %v834, 5
        %v837 = vsel %vm285, %v832, %v836
        %v839 = vshrl.u32 %v805, 16
        %v841 = vrot.slane %v839, 4
        %v842 = vshll.u32 %v805, 16
        %v844 = vrot.slane %v842, 5
        %v845 = vor.u32 %v841, %v844
        %v846 = vrot.slane %v845, 4
        %v848 = vshll.u32 %v806, 16
        %v850 = vrot.slane %v848, 5
        %v851 = vsel %vm285, %v846, %v850
        %v852 = vshrl.u32 %v806, 16
        %v854 = vrot.slane %v852, 4
        %v855 = vor.u32 %v854, %v850
        %v856 = vrot.slane %v855, 4
        %v858 = vshll.u32 %v807, 16
        %v860 = vrot.slane %v858, 5
        %v861 = vsel %vm285, %v856, %v860
        %v863 = vshrl.u32 %v808, 16
        %v865 = vrot.slane %v863, 4
        %v866 = vshll.u32 %v808, 16
        %v868 = vrot.slane %v866, 5
        %v869 = vor.u32 %v865, %v868
        %v870 = vrot.slane %v869, 4
        %v872 = vshll.u32 %v809, 16
        %v874 = vrot.slane %v872, 5
        %v875 = vsel %vm285, %v870, %v874
        %v876 = vshrl.u32 %v809, 16
        %v878 = vrot.slane %v876, 4
        %v879 = vor.u32 %v878, %v874
        %v880 = vrot.slane %v879, 4
        %v882 = vshll.u32 %v810, 16
        %v884 = vrot.slane %v882, 5
        %v885 = vsel %vm285, %v880, %v884
        %v887 = vshrl.u32 %v811, 16
        %v889 = vrot.slane %v887, 4
        %v890 = vshll.u32 %v811, 16
        %v892 = vrot.slane %v890, 5
        %v893 = vor.u32 %v889, %v892
        %v894 = vrot.slane %v893, 4
        %v896 = vshll.u32 %v812, 16
        %v898 = vrot.slane %v896, 5
        %v899 = vsel %vm285, %v894, %v898
        %v900 = vshrl.u32 %v812, 16
        %v902 = vrot.slane %v900, 4
        %v903 = vor.u32 %v902, %v898
        %v904 = vrot.slane %v903, 4
        %v906 = vshll.u32 %v813, 16
        %v908 = vrot.slane %v906, 5
        %v909 = vsel %vm285, %v904, %v908
        %s910 = scalar_lea.vmem %s213, 128 [#allocation2]
        %v911 = vld [vmem:[%s910] sm:$0xf]
        %v912 = vld [vmem:[%s910 + $0x4] sm:$0xf]
        %v913 = vld [vmem:[%s910 + $0x8] sm:$0xf]
        %v914 = vld [vmem:[%s910 + $0xc] sm:$0xf]
        %v915 = vld [vmem:[%s910 + $0x10] sm:$0xf]
        %v916 = vld [vmem:[%s910 + $0x14] sm:$0xf]
        %v917 = vld [vmem:[%s910 + $0x18] sm:$0xf]
        %v918 = vld [vmem:[%s910 + $0x1c] sm:$0xf]
        %v919 = vunpack.c.l.b16 %v827
        %v920 = vunpack.c.l.b16 %v837
        %v921 = vunpack.c.l.b16 %v851
        %v922 = vunpack.c.l.b16 %v861
        %v923 = vunpack.c.l.b16 %v875
        %v924 = vunpack.c.l.b16 %v885
        %v925 = vunpack.c.l.b16 %v899
        %v926 = vunpack.c.l.b16 %v909
        %v927 = vpack.c.b16 %v920, %v919
        %v928 = vpack.c.b16 %v922, %v921
        %v929 = vpack.c.b16 %v924, %v923
        %v930 = vpack.c.b16 %v926, %v925
        %v939 = vunpack.c.l.b16 %v911
        %v940 = vunpack.c.l.b16 %v912
        %v941 = vunpack.c.l.b16 %v913
        %v942 = vunpack.c.l.b16 %v914
        %v943 = vunpack.c.l.b16 %v915
        %v944 = vunpack.c.l.b16 %v916
        %v945 = vunpack.c.l.b16 %v917
        %v946 = vunpack.c.l.b16 %v918
        %v947 = vpack.c.b16 %v940, %v939
        %v948 = vpack.c.b16 %v942, %v941
        %v949 = vpack.c.b16 %v944, %v943
        %v950 = vpack.c.b16 %v946, %v945
        %v956 = vsel %vm427, %v927, 0
        %v959 = vsel %vm427, %v928, 0
        %v962 = vsel %vm427, %v929, 0
        %v965 = vsel %vm427, %v930, 0
        %967 = vmatpush.bf16.msra.mxu0 0
        %968 = vmatpush.bf16.msra.mxu0 0
        %969 = vmatpush.bf16.msra.mxu0 0
        %970 = vmatpush.bf16.msra.mxu0 0
        %971 = vmatpush.bf16.msra.mxu0 %v950
        %972 = vmatpush.bf16.msra.mxu0 %v949
        %973 = vmatpush.bf16.msra.mxu0 %v948
        %974 = vmatpush.bf16.msra.mxu0 %v947
        %975 = vmatmul.bf16.gmra.mxu0 %v956
        %v976 = vpop.f32.mrf.mxu0
        %v977 = vadd.f32 0.0, %v976
        %v978 = vpop.f32.mrf.mxu0
        %v979 = vadd.f32 0.0, %v978
        %980 = vmatmul.bf16.gmra.mxu0 %v959
        %v981 = vpop.f32.mrf.mxu0
        %v982 = vadd.f32 0.0, %v981
        %v983 = vpop.f32.mrf.mxu0
        %v984 = vadd.f32 0.0, %v983
        %985 = vmatmul.bf16.gmra.mxu0 %v962
        %v986 = vpop.f32.mrf.mxu0
        %v987 = vadd.f32 0.0, %v986
        %v988 = vpop.f32.mrf.mxu0
        %v989 = vadd.f32 0.0, %v988
        %990 = vmatmul.bf16.gmra.mxu0 %v965
        %v991 = vpop.f32.mrf.mxu0
        %v992 = vadd.f32 0.0, %v991
        %v993 = vpop.f32.mrf.mxu0
        %v994 = vadd.f32 0.0, %v993
        %995 = vdwg.mxu0
        %v996 = vadd.f32 %v794, %v977
        %v997 = vadd.f32 %v795, %v979
        %v998 = vadd.f32 %v796, %v982
        %v999 = vadd.f32 %v797, %v984
        %v1000 = vadd.f32 %v798, %v987
        %v1001 = vadd.f32 %v799, %v989
        %v1002 = vadd.f32 %v800, %v992
        %v1003 = vadd.f32 %v801, %v994
        %v1004 = vld [vmem:[%s691] sm:$0xe]
        %v1005 = vld [vmem:[%s691 + $0xc] sm:$0xe]
        %v1006 = vld [vmem:[%s691 + $0x18] sm:$0xe]
        %v1007 = vld [vmem:[%s691 + $0x24] sm:$0xe]
        %v1020 = vrot.slane %v1004, 5
        %v1021 = vrot.slane %v1020, 4
        %v1022 = vrot.slane %v803, 5
        %v1023 = vsel %vm568, %v1021, %v1022
        %v1024 = vrot.slane %v1022, 4
        %v1025 = vrot.slane %v804, 5
        %v1026 = vsel %vm568, %v1024, %v1025
        %v1027 = vrot.slane %v1005, 5
        %v1028 = vrot.slane %v1027, 4
        %v1029 = vrot.slane %v806, 5
        %v1030 = vsel %vm568, %v1028, %v1029
        %v1031 = vrot.slane %v1029, 4
        %v1032 = vrot.slane %v807, 5
        %v1033 = vsel %vm568, %v1031, %v1032
        %v1034 = vrot.slane %v1006, 5
        %v1035 = vrot.slane %v1034, 4
        %v1036 = vrot.slane %v809, 5
        %v1037 = vsel %vm568, %v1035, %v1036
        %v1038 = vrot.slane %v1036, 4
        %v1039 = vrot.slane %v810, 5
        %v1040 = vsel %vm568, %v1038, %v1039
        %v1041 = vrot.slane %v1007, 5
        %v1042 = vrot.slane %v1041, 4
        %v1043 = vrot.slane %v812, 5
        %v1044 = vsel %vm568, %v1042, %v1043
        %v1045 = vrot.slane %v1043, 4
        %v1046 = vrot.slane %v813, 5
        %v1047 = vsel %vm568, %v1045, %v1046
        %s1048 = scalar_lea.vmem %s213, 160 [#allocation2]
        %v1049 = vld [vmem:[%s1048] sm:$0xf]
        %v1050 = vld [vmem:[%s1048 + $0x4] sm:$0xf]
        %v1051 = vld [vmem:[%s1048 + $0x8] sm:$0xf]
        %v1052 = vld [vmem:[%s1048 + $0xc] sm:$0xf]
        %v1053 = vld [vmem:[%s1048 + $0x10] sm:$0xf]
        %v1054 = vld [vmem:[%s1048 + $0x14] sm:$0xf]
        %v1055 = vld [vmem:[%s1048 + $0x18] sm:$0xf]
        %v1056 = vld [vmem:[%s1048 + $0x1c] sm:$0xf]
        %v1057 = vunpack.c.l.b16 %v1023
        %v1058 = vunpack.c.l.b16 %v1026
        %v1059 = vunpack.c.l.b16 %v1030
        %v1060 = vunpack.c.l.b16 %v1033
        %v1061 = vunpack.c.l.b16 %v1037
        %v1062 = vunpack.c.l.b16 %v1040
        %v1063 = vunpack.c.l.b16 %v1044
        %v1064 = vunpack.c.l.b16 %v1047
        %v1065 = vpack.c.b16 %v1058, %v1057
        %v1066 = vpack.c.b16 %v1060, %v1059
        %v1067 = vpack.c.b16 %v1062, %v1061
        %v1068 = vpack.c.b16 %v1064, %v1063
        %v1077 = vunpack.c.l.b16 %v1049
        %v1078 = vunpack.c.l.b16 %v1050
        %v1079 = vunpack.c.l.b16 %v1051
        %v1080 = vunpack.c.l.b16 %v1052
        %v1081 = vunpack.c.l.b16 %v1053
        %v1082 = vunpack.c.l.b16 %v1054
        %v1083 = vunpack.c.l.b16 %v1055
        %v1084 = vunpack.c.l.b16 %v1056
        %v1085 = vpack.c.b16 %v1078, %v1077
        %v1086 = vpack.c.b16 %v1080, %v1079
        %v1087 = vpack.c.b16 %v1082, %v1081
        %v1088 = vpack.c.b16 %v1084, %v1083
        %v1094 = vsel %vm427, %v1065, 0
        %v1097 = vsel %vm427, %v1066, 0
        %v1100 = vsel %vm427, %v1067, 0
        %v1103 = vsel %vm427, %v1068, 0
        %1105 = vmatpush.bf16.msra.mxu0 0
        %1106 = vmatpush.bf16.msra.mxu0 0
        %1107 = vmatpush.bf16.msra.mxu0 0
        %1108 = vmatpush.bf16.msra.mxu0 0
        %1109 = vmatpush.bf16.msra.mxu0 %v1088
        %1110 = vmatpush.bf16.msra.mxu0 %v1087
        %1111 = vmatpush.bf16.msra.mxu0 %v1086
        %1112 = vmatpush.bf16.msra.mxu0 %v1085
        %1113 = vmatmul.bf16.gmra.mxu0 %v1094
        %v1114 = vpop.f32.mrf.mxu0
        %v1115 = vadd.f32 0.0, %v1114
        %v1116 = vpop.f32.mrf.mxu0
        %v1117 = vadd.f32 0.0, %v1116
        %1118 = vmatmul.bf16.gmra.mxu0 %v1097
        %v1119 = vpop.f32.mrf.mxu0
        %v1120 = vadd.f32 0.0, %v1119
        %v1121 = vpop.f32.mrf.mxu0
        %v1122 = vadd.f32 0.0, %v1121
        %1123 = vmatmul.bf16.gmra.mxu0 %v1100
        %v1124 = vpop.f32.mrf.mxu0
        %v1125 = vadd.f32 0.0, %v1124
        %v1126 = vpop.f32.mrf.mxu0
        %v1127 = vadd.f32 0.0, %v1126
        %1128 = vmatmul.bf16.gmra.mxu0 %v1103
        %v1129 = vpop.f32.mrf.mxu0
        %v1130 = vadd.f32 0.0, %v1129
        %v1131 = vpop.f32.mrf.mxu0
        %v1132 = vadd.f32 0.0, %v1131
        %1133 = vdwg.mxu0
        %v1134 = vadd.f32 %v996, %v1115
        %v1135 = vadd.f32 %v997, %v1117
        %v1136 = vadd.f32 %v998, %v1120
        %v1137 = vadd.f32 %v999, %v1122
        %v1138 = vadd.f32 %v1000, %v1125
        %v1139 = vadd.f32 %v1001, %v1127
        %v1140 = vadd.f32 %v1002, %v1130
        %v1141 = vadd.f32 %v1003, %v1132
        %s1142 = scalar_lea.vmem %s257, 24
        %v1143 = vld [vmem:[%s1142] sm:$0xf]
        %v1144 = vld [vmem:[%s1142 + $0x4] sm:$0xf]
        %v1145 = vld [vmem:[%s1142 + $0xc] sm:$0xf]
        %v1146 = vld [vmem:[%s1142 + $0x10] sm:$0xf]
        %v1147 = vld [vmem:[%s1142 + $0x18] sm:$0xf]
        %v1148 = vld [vmem:[%s1142 + $0x1c] sm:$0xf]
        %v1149 = vld [vmem:[%s1142 + $0x24] sm:$0xf]
        %v1150 = vld [vmem:[%s1142 + $0x28] sm:$0xf]
        %s1151 = scalar_lea.vmem %s213, 192 [#allocation2]
        %v1152 = vld [vmem:[%s1151] sm:$0xf]
        %v1153 = vld [vmem:[%s1151 + $0x4] sm:$0xf]
        %v1154 = vld [vmem:[%s1151 + $0x8] sm:$0xf]
        %v1155 = vld [vmem:[%s1151 + $0xc] sm:$0xf]
        %v1156 = vld [vmem:[%s1151 + $0x10] sm:$0xf]
        %v1157 = vld [vmem:[%s1151 + $0x14] sm:$0xf]
        %v1158 = vld [vmem:[%s1151 + $0x18] sm:$0xf]
        %v1159 = vld [vmem:[%s1151 + $0x1c] sm:$0xf]
        %v1168 = vunpack.c.l.b16 %v1143
        %v1169 = vunpack.c.l.b16 %v1144
        %v1170 = vunpack.c.l.b16 %v1145
        %v1171 = vunpack.c.l.b16 %v1146
        %v1172 = vunpack.c.l.b16 %v1147
        %v1173 = vunpack.c.l.b16 %v1148
        %v1174 = vunpack.c.l.b16 %v1149
        %v1175 = vunpack.c.l.b16 %v1150
        %v1176 = vpack.c.b16 %v1169, %v1168
        %v1177 = vpack.c.b16 %v1171, %v1170
        %v1178 = vpack.c.b16 %v1173, %v1172
        %v1179 = vpack.c.b16 %v1175, %v1174
        %v1188 = vunpack.c.l.b16 %v1152
        %v1189 = vunpack.c.l.b16 %v1153
        %v1190 = vunpack.c.l.b16 %v1154
        %v1191 = vunpack.c.l.b16 %v1155
        %v1192 = vunpack.c.l.b16 %v1156
        %v1193 = vunpack.c.l.b16 %v1157
        %v1194 = vunpack.c.l.b16 %v1158
        %v1195 = vunpack.c.l.b16 %v1159
        %v1196 = vpack.c.b16 %v1189, %v1188
        %v1197 = vpack.c.b16 %v1191, %v1190
        %v1198 = vpack.c.b16 %v1193, %v1192
        %v1199 = vpack.c.b16 %v1195, %v1194
        %v1205 = vsel %vm427, %v1176, 0
        %v1208 = vsel %vm427, %v1177, 0
        %v1211 = vsel %vm427, %v1178, 0
        %v1214 = vsel %vm427, %v1179, 0
        %1216 = vmatpush.bf16.msra.mxu0 0
        %1217 = vmatpush.bf16.msra.mxu0 0
        %1218 = vmatpush.bf16.msra.mxu0 0
        %1219 = vmatpush.bf16.msra.mxu0 0
        %1220 = vmatpush.bf16.msra.mxu0 %v1199
        %1221 = vmatpush.bf16.msra.mxu0 %v1198
        %1222 = vmatpush.bf16.msra.mxu0 %v1197
        %1223 = vmatpush.bf16.msra.mxu0 %v1196
        %1224 = vmatmul.bf16.gmra.mxu0 %v1205
        %v1225 = vpop.f32.mrf.mxu0
        %v1226 = vadd.f32 0.0, %v1225
        %v1227 = vpop.f32.mrf.mxu0
        %v1228 = vadd.f32 0.0, %v1227
        %1229 = vmatmul.bf16.gmra.mxu0 %v1208
        %v1230 = vpop.f32.mrf.mxu0
        %v1231 = vadd.f32 0.0, %v1230
        %v1232 = vpop.f32.mrf.mxu0
        %v1233 = vadd.f32 0.0, %v1232
        %1234 = vmatmul.bf16.gmra.mxu0 %v1211
        %v1235 = vpop.f32.mrf.mxu0
        %v1236 = vadd.f32 0.0, %v1235
        %v1237 = vpop.f32.mrf.mxu0
        %v1238 = vadd.f32 0.0, %v1237
        %1239 = vmatmul.bf16.gmra.mxu0 %v1214
        %v1240 = vpop.f32.mrf.mxu0
        %v1241 = vadd.f32 0.0, %v1240
        %v1242 = vpop.f32.mrf.mxu0
        %v1243 = vadd.f32 0.0, %v1242
        %1244 = vdwg.mxu0
        %v1245 = vadd.f32 %v1134, %v1226
        %v1246 = vadd.f32 %v1135, %v1228
        %v1247 = vadd.f32 %v1136, %v1231
        %v1248 = vadd.f32 %v1137, %v1233
        %v1249 = vadd.f32 %v1138, %v1236
        %v1250 = vadd.f32 %v1139, %v1238
        %v1251 = vadd.f32 %v1140, %v1241
        %v1252 = vadd.f32 %v1141, %v1243
        %v1253 = vld [vmem:[%s1142] sm:$0xf]
        %v1254 = vld [vmem:[%s1142 + $0x4] sm:$0xf]
        %v1255 = vld [vmem:[%s1142 + $0x8] sm:$0x1]
        %v1256 = vld [vmem:[%s1142 + $0xc] sm:$0xf]
        %v1257 = vld [vmem:[%s1142 + $0x10] sm:$0xf]
        %v1258 = vld [vmem:[%s1142 + $0x14] sm:$0x1]
        %v1259 = vld [vmem:[%s1142 + $0x18] sm:$0xf]
        %v1260 = vld [vmem:[%s1142 + $0x1c] sm:$0xf]
        %v1261 = vld [vmem:[%s1142 + $0x20] sm:$0x1]
        %v1262 = vld [vmem:[%s1142 + $0x24] sm:$0xf]
        %v1263 = vld [vmem:[%s1142 + $0x28] sm:$0xf]
        %v1264 = vld [vmem:[%s1142 + $0x2c] sm:$0x1]
        %v1266 = vshrl.u32 %v1253, 16
        %v1268 = vrot.slane %v1266, 4
        %v1269 = vshll.u32 %v1253, 16
        %v1271 = vrot.slane %v1269, 5
        %v1272 = vor.u32 %v1268, %v1271
        %v1273 = vrot.slane %v1272, 4
        %v1275 = vshll.u32 %v1254, 16
        %v1277 = vrot.slane %v1275, 5
        %v1278 = vsel %vm285, %v1273, %v1277
        %v1279 = vshrl.u32 %v1254, 16
        %v1281 = vrot.slane %v1279, 4
        %v1282 = vor.u32 %v1281, %v1277
        %v1283 = vrot.slane %v1282, 4
        %v1285 = vshll.u32 %v1255, 16
        %v1287 = vrot.slane %v1285, 5
        %v1288 = vsel %vm285, %v1283, %v1287
        %v1290 = vshrl.u32 %v1256, 16
        %v1292 = vrot.slane %v1290, 4
        %v1293 = vshll.u32 %v1256, 16
        %v1295 = vrot.slane %v1293, 5
        %v1296 = vor.u32 %v1292, %v1295
        %v1297 = vrot.slane %v1296, 4
        %v1299 = vshll.u32 %v1257, 16
        %v1301 = vrot.slane %v1299, 5
        %v1302 = vsel %vm285, %v1297, %v1301
        %v1303 = vshrl.u32 %v1257, 16
        %v1305 = vrot.slane %v1303, 4
        %v1306 = vor.u32 %v1305, %v1301
        %v1307 = vrot.slane %v1306, 4
        %v1309 = vshll.u32 %v1258, 16
        %v1311 = vrot.slane %v1309, 5
        %v1312 = vsel %vm285, %v1307, %v1311
        %v1314 = vshrl.u32 %v1259, 16
        %v1316 = vrot.slane %v1314, 4
        %v1317 = vshll.u32 %v1259, 16
        %v1319 = vrot.slane %v1317, 5
        %v1320 = vor.u32 %v1316, %v1319
        %v1321 = vrot.slane %v1320, 4
        %v1323 = vshll.u32 %v1260, 16
        %v1325 = vrot.slane %v1323, 5
        %v1326 = vsel %vm285, %v1321, %v1325
        %v1327 = vshrl.u32 %v1260, 16
        %v1329 = vrot.slane %v1327, 4
        %v1330 = vor.u32 %v1329, %v1325
        %v1331 = vrot.slane %v1330, 4
        %v1333 = vshll.u32 %v1261, 16
        %v1335 = vrot.slane %v1333, 5
        %v1336 = vsel %vm285, %v1331, %v1335
        %v1338 = vshrl.u32 %v1262, 16
        %v1340 = vrot.slane %v1338, 4
        %v1341 = vshll.u32 %v1262, 16
        %v1343 = vrot.slane %v1341, 5
        %v1344 = vor.u32 %v1340, %v1343
        %v1345 = vrot.slane %v1344, 4
        %v1347 = vshll.u32 %v1263, 16
        %v1349 = vrot.slane %v1347, 5
        %v1350 = vsel %vm285, %v1345, %v1349
        %v1351 = vshrl.u32 %v1263, 16
        %v1353 = vrot.slane %v1351, 4
        %v1354 = vor.u32 %v1353, %v1349
        %v1355 = vrot.slane %v1354, 4
        %v1357 = vshll.u32 %v1264, 16
        %v1359 = vrot.slane %v1357, 5
        %v1360 = vsel %vm285, %v1355, %v1359
        %s1361 = scalar_lea.vmem %s213, 224 [#allocation2]
        %v1362 = vld [vmem:[%s1361] sm:$0xf]
        %v1363 = vld [vmem:[%s1361 + $0x4] sm:$0xf]
        %v1364 = vld [vmem:[%s1361 + $0x8] sm:$0xf]
        %v1365 = vld [vmem:[%s1361 + $0xc] sm:$0xf]
        %v1366 = vld [vmem:[%s1361 + $0x10] sm:$0xf]
        %v1367 = vld [vmem:[%s1361 + $0x14] sm:$0xf]
        %v1368 = vld [vmem:[%s1361 + $0x18] sm:$0xf]
        %v1369 = vld [vmem:[%s1361 + $0x1c] sm:$0xf]
        %v1370 = vunpack.c.l.b16 %v1278
        %v1371 = vunpack.c.l.b16 %v1288
        %v1372 = vunpack.c.l.b16 %v1302
        %v1373 = vunpack.c.l.b16 %v1312
        %v1374 = vunpack.c.l.b16 %v1326
        %v1375 = vunpack.c.l.b16 %v1336
        %v1376 = vunpack.c.l.b16 %v1350
        %v1377 = vunpack.c.l.b16 %v1360
        %v1378 = vpack.c.b16 %v1371, %v1370
        %v1379 = vpack.c.b16 %v1373, %v1372
        %v1380 = vpack.c.b16 %v1375, %v1374
        %v1381 = vpack.c.b16 %v1377, %v1376
        %v1390 = vunpack.c.l.b16 %v1362
        %v1391 = vunpack.c.l.b16 %v1363
        %v1392 = vunpack.c.l.b16 %v1364
        %v1393 = vunpack.c.l.b16 %v1365
        %v1394 = vunpack.c.l.b16 %v1366
        %v1395 = vunpack.c.l.b16 %v1367
        %v1396 = vunpack.c.l.b16 %v1368
        %v1397 = vunpack.c.l.b16 %v1369
        %v1398 = vpack.c.b16 %v1391, %v1390
        %v1399 = vpack.c.b16 %v1393, %v1392
        %v1400 = vpack.c.b16 %v1395, %v1394
        %v1401 = vpack.c.b16 %v1397, %v1396
        %v1407 = vsel %vm427, %v1378, 0
        %v1410 = vsel %vm427, %v1379, 0
        %v1413 = vsel %vm427, %v1380, 0
        %v1416 = vsel %vm427, %v1381, 0
        %1418 = vmatpush.bf16.msra.mxu0 0
        %1419 = vmatpush.bf16.msra.mxu0 0
        %1420 = vmatpush.bf16.msra.mxu0 0
        %1421 = vmatpush.bf16.msra.mxu0 0
        %1422 = vmatpush.bf16.msra.mxu0 %v1401
        %1423 = vmatpush.bf16.msra.mxu0 %v1400
        %1424 = vmatpush.bf16.msra.mxu0 %v1399
        %1425 = vmatpush.bf16.msra.mxu0 %v1398
        %1426 = vmatmul.bf16.gmra.mxu0 %v1407
        %v1427 = vpop.f32.mrf.mxu0
        %v1428 = vadd.f32 0.0, %v1427
        %v1429 = vpop.f32.mrf.mxu0
        %v1430 = vadd.f32 0.0, %v1429
        %1431 = vmatmul.bf16.gmra.mxu0 %v1410
        %v1432 = vpop.f32.mrf.mxu0
        %v1433 = vadd.f32 0.0, %v1432
        %v1434 = vpop.f32.mrf.mxu0
        %v1435 = vadd.f32 0.0, %v1434
        %1436 = vmatmul.bf16.gmra.mxu0 %v1413
        %v1437 = vpop.f32.mrf.mxu0
        %v1438 = vadd.f32 0.0, %v1437
        %v1439 = vpop.f32.mrf.mxu0
        %v1440 = vadd.f32 0.0, %v1439
        %1441 = vmatmul.bf16.gmra.mxu0 %v1416
        %v1442 = vpop.f32.mrf.mxu0
        %v1443 = vadd.f32 0.0, %v1442
        %v1444 = vpop.f32.mrf.mxu0
        %v1445 = vadd.f32 0.0, %v1444
        %1446 = vdwg.mxu0
        %v1447 = vadd.f32 %v1245, %v1428
        %v1448 = vadd.f32 %v1246, %v1430
        %v1449 = vadd.f32 %v1247, %v1433
        %v1450 = vadd.f32 %v1248, %v1435
        %v1451 = vadd.f32 %v1249, %v1438
        %v1452 = vadd.f32 %v1250, %v1440
        %v1453 = vadd.f32 %v1251, %v1443
        %v1454 = vadd.f32 %v1252, %v1445
        %v1455 = vld [vmem:[%s1142] sm:$0xe]
        %v1456 = vld [vmem:[%s1142 + $0xc] sm:$0xe]
        %v1457 = vld [vmem:[%s1142 + $0x18] sm:$0xe]
        %v1458 = vld [vmem:[%s1142 + $0x24] sm:$0xe]
        %v1471 = vrot.slane %v1455, 5
        %v1472 = vrot.slane %v1471, 4
        %v1473 = vrot.slane %v1254, 5
        %v1474 = vsel %vm568, %v1472, %v1473
        %v1475 = vrot.slane %v1473, 4
        %v1476 = vrot.slane %v1255, 5
        %v1477 = vsel %vm568, %v1475, %v1476
        %v1478 = vrot.slane %v1456, 5
        %v1479 = vrot.slane %v1478, 4
        %v1480 = vrot.slane %v1257, 5
        %v1481 = vsel %vm568, %v1479, %v1480
        %v1482 = vrot.slane %v1480, 4
        %v1483 = vrot.slane %v1258, 5
        %v1484 = vsel %vm568, %v1482, %v1483
        %v1485 = vrot.slane %v1457, 5
        %v1486 = vrot.slane %v1485, 4
        %v1487 = vrot.slane %v1260, 5
        %v1488 = vsel %vm568, %v1486, %v1487
        %v1489 = vrot.slane %v1487, 4
        %v1490 = vrot.slane %v1261, 5
        %v1491 = vsel %vm568, %v1489, %v1490
        %v1492 = vrot.slane %v1458, 5
        %v1493 = vrot.slane %v1492, 4
        %v1494 = vrot.slane %v1263, 5
        %v1495 = vsel %vm568, %v1493, %v1494
        %v1496 = vrot.slane %v1494, 4
        %v1497 = vrot.slane %v1264, 5
        %v1498 = vsel %vm568, %v1496, %v1497
        %s1499 = scalar_lea.vmem %s213, 256 [#allocation2]
        %v1500 = vld [vmem:[%s1499] sm:$0xf]
        %v1501 = vld [vmem:[%s1499 + $0x4] sm:$0xf]
        %v1502 = vld [vmem:[%s1499 + $0x8] sm:$0xf]
        %v1503 = vld [vmem:[%s1499 + $0xc] sm:$0xf]
        %v1504 = vld [vmem:[%s1499 + $0x10] sm:$0xf]
        %v1505 = vld [vmem:[%s1499 + $0x14] sm:$0xf]
        %v1506 = vld [vmem:[%s1499 + $0x18] sm:$0xf]
        %v1507 = vld [vmem:[%s1499 + $0x1c] sm:$0xf]
        %v1508 = vunpack.c.l.b16 %v1474
        %v1509 = vunpack.c.l.b16 %v1477
        %v1510 = vunpack.c.l.b16 %v1481
        %v1511 = vunpack.c.l.b16 %v1484
        %v1512 = vunpack.c.l.b16 %v1488
        %v1513 = vunpack.c.l.b16 %v1491
        %v1514 = vunpack.c.l.b16 %v1495
        %v1515 = vunpack.c.l.b16 %v1498
        %v1516 = vpack.c.b16 %v1509, %v1508
        %v1517 = vpack.c.b16 %v1511, %v1510
        %v1518 = vpack.c.b16 %v1513, %v1512
        %v1519 = vpack.c.b16 %v1515, %v1514
        %v1528 = vunpack.c.l.b16 %v1500
        %v1529 = vunpack.c.l.b16 %v1501
        %v1530 = vunpack.c.l.b16 %v1502
        %v1531 = vunpack.c.l.b16 %v1503
        %v1532 = vunpack.c.l.b16 %v1504
        %v1533 = vunpack.c.l.b16 %v1505
        %v1534 = vunpack.c.l.b16 %v1506
        %v1535 = vunpack.c.l.b16 %v1507
        %v1536 = vpack.c.b16 %v1529, %v1528
        %v1537 = vpack.c.b16 %v1531, %v1530
        %v1538 = vpack.c.b16 %v1533, %v1532
        %v1539 = vpack.c.b16 %v1535, %v1534
        %v1545 = vsel %vm427, %v1516, 0
        %v1548 = vsel %vm427, %v1517, 0
        %v1551 = vsel %vm427, %v1518, 0
        %v1554 = vsel %vm427, %v1519, 0
        %1556 = vmatpush.bf16.msra.mxu0 0
        %1557 = vmatpush.bf16.msra.mxu0 0
        %1558 = vmatpush.bf16.msra.mxu0 0
        %1559 = vmatpush.bf16.msra.mxu0 0
        %1560 = vmatpush.bf16.msra.mxu0 %v1539
        %1561 = vmatpush.bf16.msra.mxu0 %v1538
        %1562 = vmatpush.bf16.msra.mxu0 %v1537
        %1563 = vmatpush.bf16.msra.mxu0 %v1536
        %1564 = vmatmul.bf16.gmra.mxu0 %v1545
        %v1565 = vpop.f32.mrf.mxu0
        %v1566 = vadd.f32 0.0, %v1565
        %v1567 = vpop.f32.mrf.mxu0
        %v1568 = vadd.f32 0.0, %v1567
        %1569 = vmatmul.bf16.gmra.mxu0 %v1548
        %v1570 = vpop.f32.mrf.mxu0
        %v1571 = vadd.f32 0.0, %v1570
        %v1572 = vpop.f32.mrf.mxu0
        %v1573 = vadd.f32 0.0, %v1572
        %1574 = vmatmul.bf16.gmra.mxu0 %v1551
        %v1575 = vpop.f32.mrf.mxu0
        %v1576 = vadd.f32 0.0, %v1575
        %v1577 = vpop.f32.mrf.mxu0
        %v1578 = vadd.f32 0.0, %v1577
        %1579 = vmatmul.bf16.gmra.mxu0 %v1554
        %v1580 = vpop.f32.mrf.mxu0
        %v1581 = vadd.f32 0.0, %v1580
        %v1582 = vpop.f32.mrf.mxu0
        %v1583 = vadd.f32 0.0, %v1582
        %1584 = vdwg.mxu0
        %v1585 = vadd.f32 %v1447, %v1566
        %v1586 = vadd.f32 %v1448, %v1568
        %v1587 = vadd.f32 %v1449, %v1571
        %v1588 = vadd.f32 %v1450, %v1573
        %v1589 = vadd.f32 %v1451, %v1576
        %v1590 = vadd.f32 %v1452, %v1578
        %v1591 = vadd.f32 %v1453, %v1581
        %v1592 = vadd.f32 %v1454, %v1583
        %v1593 = vld [vmem:[%s260] sm:$0x1]
        %v1595 = vperm.slane %v1593, 0
        %v1597 = vadd.f32 %v1585, %v1595
        %v1598 = vadd.f32 %v1586, %v1595
        %v1599 = vadd.f32 %v1587, %v1595
        %v1600 = vadd.f32 %v1588, %v1595
        %v1601 = vadd.f32 %v1589, %v1595
        %v1602 = vadd.f32 %v1590, %v1595
        %v1603 = vadd.f32 %v1591, %v1595
        %v1604 = vadd.f32 %v1592, %v1595
        %v1605 = vmax.f32 %v1597, 0.0
        %v1606 = vmax.f32 %v1598, 0.0
        %v1607 = vmax.f32 %v1599, 0.0
        %v1608 = vmax.f32 %v1600, 0.0
        %v1609 = vmax.f32 %v1601, 0.0
        %v1610 = vmax.f32 %v1602, 0.0
        %v1611 = vmax.f32 %v1603, 0.0
        %v1612 = vmax.f32 %v1604, 0.0
        %v1613 = vpack.c.bf16 %v1605, %v1605
        %v1614 = vpack.c.bf16 %v1606, %v1606
        %v1615 = vpack.c.bf16 %v1607, %v1607
        %v1616 = vpack.c.bf16 %v1608, %v1608
        %v1617 = vpack.c.bf16 %v1609, %v1609
        %v1618 = vpack.c.bf16 %v1610, %v1610
        %v1619 = vpack.c.bf16 %v1611, %v1611
        %v1620 = vpack.c.bf16 %v1612, %v1612
        %1621 = vst [vmem:[%s248] sm:$0xf] %v1613
        %1622 = vst [vmem:[%s248 + $0x4] sm:$0xf] %v1614
        %1623 = vst [vmem:[%s248 + $0x8] sm:$0xf] %v1615
        %1624 = vst [vmem:[%s248 + $0xc] sm:$0xf] %v1616
        %1625 = vst [vmem:[%s248 + $0x10] sm:$0xf] %v1617
        %1626 = vst [vmem:[%s248 + $0x14] sm:$0xf] %v1618
        %1627 = vst [vmem:[%s248 + $0x18] sm:$0xf] %v1619
        %1628 = vst [vmem:[%s248 + $0x1c] sm:$0xf] %v1620
        %s1629 = sand.u32 %s131, 1
        %s1630 = scalar_lea.sflag [#allocation4], %s1629
        %s1631 = sand.u32 %s131, 1
        %s1632 = smul.addr %s1631, 32
        %s1633 = scalar_lea.vmem [#allocation5], %s1632
        // Predicated region
        $region37: #{tpu_custom_call.1} parent=31 // pred_check
          %p1634 = pneg %p141
        $region38: #{tpu_custom_call.1} parent=31 // pred_check_branch
          %1636 = sbr.rel (%p1634) target = $region40
        $region39: #{tpu_custom_call.1} parent=31 // pred_region
          %s1637 = smul.u32 4, %s26
          %1639 = vsyncadd %s1630, 0
          %s1640 = smul.addr %s1637, 4
          %s1641 = sadd.s32 %s27, %s1640
          %s1642 = smul.addr %s25, 64
          %s1643 = sadd.s32 %s1641, %s1642
          %s1644 = smul.addr %s1643, 4
          %s1645 = scalar_lea.hbm %s3, %s1644
          %s1646 = sshll.u32 %s1633, 4
          %s1647 = int_to_ptr.vmem [resolvable:$true] %s1646
          %s1648 = sshll.u32 %s1645, 4
          %s1649 = int_to_ptr.hbm [resolvable:$true] %s1648
          %1654 = dma.vmem_to_hbm [thread:$0]  %s1647, 512, %s1649, %s1630, 64, 128, 4
        $region40: #{tpu_custom_call.1} parent=31 // pred_fallthru
          _
      $region32: #{tpu_custom_call.1} parent=5 // pred_fallthru
        _
      %p1655 = scmp.le.s32.totalorder 2, %s15
      // Predicated region
      $region41: #{tpu_custom_call.1} parent=5 // pred_check
        %p1656 = pneg %p1655
      $region42: #{tpu_custom_call.1} parent=5 // pred_check_branch
        %1658 = sbr.rel (%p1656) target = $region44
      $region43: #{tpu_custom_call.1} parent=5 // pred_region
        %s1659 = ssub.s32 %s15, 2
        // Predicated region
        $region45: #{tpu_custom_call.1} parent=43 // pred_check
          %p1660 = pneg %p147
        $region46: #{tpu_custom_call.1} parent=43 // pred_check_branch
          %1662 = sbr.rel (%p1660) target = $region48
        $region47: #{tpu_custom_call.1} parent=43 // pred_region
          %s1663 = sand.u32 %s132, 1
          %s1664 = scalar_lea.sflag [#allocation4], %s1663
          %s1665 = sand.u32 %s132, 1
          %s1666 = smul.addr %s1665, 32
          %s1667 = scalar_lea.vmem [#allocation5], %s1666
          %1669 = dma.done %s1664, 512
        $region48: #{tpu_custom_call.1} parent=43 // pred_fallthru
          _
      $region44: #{tpu_custom_call.1} parent=5 // pred_fallthru
        _
    $region6: #{tpu_custom_call.1} parent=1 // loop_footer
      %s19 = sadd.s32 1, %s15
    $region7: #{tpu_custom_call.1} parent=1 // loop_footer_branch
      %14 = sbr.rel target = $region3
    $region8: #{tpu_custom_call.1} parent=1 // loop_exit
      _
    %1670 = vsyncpa [#allocation3], 1
    %s1671 = scalar_lea.sflag [#allocation3], 1
    %1672 = vsyncpa %s1671, 1
    %1673 = vsyncpa [#allocation4], 1
    %s1674 = scalar_lea.sflag [#allocation4], 1
    %1675 = vsyncpa %s1674, 1

</llo_original>
